<compile_context>
chip_gen: v6e
topology: v6e:2x2x1
jax: 0.10.0
libtpu: 0.0.40
codegen_flags: <defaults>
</compile_context>

<pallas_src>
import functools

import jax
import jax.numpy as jnp
from jax import lax
from jax.experimental import pallas as pl
from jax.experimental.pallas import tpu as pltpu


# ---------------------------------------------------------------------------
# Fused Pallas kernel: one image (channel-major, lane-dense) per grid step.
# ---------------------------------------------------------------------------
def _tbasic_block_kernel(x_ref, w1_ref, b1_ref, w2_ref, b2_ref, mask_ref, o_ref,
                         xpad_ref, patch_ref, *, H, W, RS, C):
    # x_ref:     (1, C, Mp)   input, channel-major, W zero-padded to RS (Mp = H*RS lanes)
    # w1/w2_ref: (C, 18*C)    stage folded weights (BN scale folded, pre-transposed)
    # b1/b2_ref: (C, 1)       stage folded BN biases
    # mask_ref:  (1, Mp)      1.0 where the lane is a real pixel (w < W), 0.0 for pad columns
    # o_ref:     (1, C, Mp)   output, same layout as x
    # xpad_ref:  (C, FR)      VMEM scratch: flat halo-2 padded frame (row stride RS)
    # patch_ref: (18*C, Mp)   VMEM scratch: transposed im2col patch
    Mp = H * RS
    s0 = 2 * RS + 2            # flat offset of output pixel (0, 0) inside the halo-2 frame

    # Flat tap shifts inside the halo-2 frame, ordered to match the combined weight rows:
    #   even output channels: k=3, pad=1, dilation=1 -> offset (dy+1, dx+1)
    #   odd  output channels: k=3, pad=2, dilation=2 -> offset (2*dy, 2*dx)
    shifts = []
    for dy in range(3):
        for dx in range(3):
            shifts.append((dy + 1) * RS + (dx + 1))   # dilation-1 group
            shifts.append((2 * dy) * RS + (2 * dx))   # dilation-2 group

    def conv_bn(w_ref, b_ref):
        # Transposed im2col: each tap writes C full-width rows (dense, 128-lane multiples),
        # then a single MXU matmul with the spatial dimension on the output lanes.
        for t, s in enumerate(shifts):
            patch_ref[t * C:(t + 1) * C, :] = xpad_ref[:, s:s + Mp]
        acc = jnp.dot(w_ref[...], patch_ref[...],
                      preferred_element_type=jnp.float32)          # (C, Mp), lane-dense
        return acc + b_ref[...]                                    # BN scale folded into w

    def lrelu(v):
        return jnp.maximum(v, jnp.float32(0.1) * v)

    # Zero the (tiny) flat frame, then write the interior with one contiguous flat store.
    # Re-done every grid step so the halo is valid on every core however the grid is sharded.
    xpad_ref[...] = jnp.zeros(xpad_ref.shape, xpad_ref.dtype)
    # x's pad columns (w >= W) are already zero from the wrapper, so this flat write cannot
    # corrupt the zero halo of neighbouring rows.
    xpad_ref[:, s0:s0 + Mp] = x_ref[0].astype(jnp.float32)

    # Stage 1: conv1 -> BN1 -> LeakyReLU(0.1).  Result stays resident in VMEM and is written
    # straight back into the padded frame for stage 2 (no HBM round trip).  The mask zeroes
    # the junk pad columns so the flat writeback keeps the halo at exactly zero.
    y1 = lrelu(conv_bn(w1_ref, b1_ref))                            # (C, Mp)
    xpad_ref[:, s0:s0 + Mp] = y1 * mask_ref[...]

    # Stage 2: conv2 -> BN2 -> + identity residual (input block already resident) -> LReLU.
    y2 = conv_bn(w2_ref, b2_ref) + x_ref[0].astype(jnp.float32)
    o_ref[...] = lrelu(y2).reshape(o_ref.shape).astype(o_ref.dtype)


# ---------------------------------------------------------------------------
# Parameter folding: conv weight + BN(eval) -> transposed im2col weight + bias.
# ---------------------------------------------------------------------------
def _fold_stage_params(w_oihw, bn, eps=1e-5):
    """(Cout,Cin,3,3) weight + BN stats -> (Cout, 18*Cin) weight and (Cout, 1) bias.

    Column layout of the combined weight (matches the kernel's patch row layout):
      col ((3*dy + dx)*2 + g)*Cin + ci, g = 0 (dilation-1, even output channels) /
      g = 1 (dilation-2, odd output channels).  BN scale is folded in.
    """
    Cout, Cin = w_oihw.shape[0], w_oihw.shape[1]
    scale = bn["gamma"] * lax.rsqrt(bn["var"] + eps)
    bias = bn["beta"] - bn["mean"] * scale
    w_taps = jnp.transpose(w_oihw, (2, 3, 1, 0)).reshape(9, Cin, Cout)   # (tap, ci, co)
    even = (jnp.arange(Cout) % 2 == 0)[None, None, :]
    w_d1 = jnp.where(even, w_taps, 0.0)            # dilation-1 rows feed even channels
    w_d2 = jnp.where(even, 0.0, w_taps)            # dilation-2 rows feed odd channels
    w_comb = jnp.stack([w_d1, w_d2], axis=1).reshape(18 * Cin, Cout)
    w_comb = w_comb * scale[None, :]               # fold BN scale into the matmul
    return (jnp.transpose(w_comb).astype(jnp.float32),     # (Cout, 18*Cin)
            bias.reshape(Cout, 1).astype(jnp.float32))


def _row_stride(H, W):
    """Smallest padded row stride >= W+4 (2-pixel halo) keeping H*RS a multiple of 128."""
    base = W + 4
    for rs in range(base, base + 16):
        if (H * rs) % 128 == 0:
            return rs
    return base        # fallback: still correct, last output vreg partially masked


# ---------------------------------------------------------------------------
# TBasicBlock forward (single fused pallas_call)
# ---------------------------------------------------------------------------
def init_tbasicblock_params(key, in_planes, out_planes):
    k1, k2 = jax.random.split(key)
    # Conv weights: per-output-channel 3x3 kernels, (Cout, Cin, 3, 3), no bias.
    w1 = 0.1 * jax.random.normal(k1, (out_planes, in_planes, 3, 3), jnp.float32)
    w2 = 0.1 * jax.random.normal(k2, (out_planes, out_planes, 3, 3), jnp.float32)
    # BatchNorm2d default init: weight=1, bias=0, running_mean=0, running_var=1.
    bn = lambda c: dict(gamma=jnp.ones((c,), jnp.float32),
                        beta=jnp.zeros((c,), jnp.float32),
                        mean=jnp.zeros((c,), jnp.float32),
                        var=jnp.ones((c,), jnp.float32))
    return dict(w1=w1, w2=w2, bn1=bn(out_planes), bn2=bn(out_planes))


@jax.jit
def tbasic_block_forward(x_nchw, params):
    N, Cin, H, W = x_nchw.shape
    Cout = params["w1"].shape[0]
    assert Cin == Cout and Cout % 2 == 0, \
        "identity residual (downsample=None, stride=1) requires in_planes == out_planes (even)"
    C = Cout

    RS = _row_stride(H, W)                         # padded row stride (lane-dense rows)
    Mp = H * RS                                    # flattened spatial lane dimension
    FR = (((H + 5) * RS) + 127) // 128 * 128       # flat frame length (>= max tap shift + Mp)

    # NCHW is already channel-major: zero-pad W -> RS and flatten the spatial dims.
    # The zero padding doubles as the "pad column" zeros the kernel relies on.
    x_flat = jnp.pad(x_nchw, ((0, 0), (0, 0), (0, 0), (0, RS - W))).reshape(N, C, Mp)

    w1, b1 = _fold_stage_params(params["w1"], params["bn1"])
    w2, b2 = _fold_stage_params(params["w2"], params["bn2"])
    mask = jnp.tile((jnp.arange(RS) < W).astype(jnp.float32), (H,)).reshape(1, Mp)

    # Advisory cost estimate: useful MACs only (each output channel uses 9 taps x C inputs).
    flops = 2 * 2 * N * H * W * 9 * C * C
    bytes_accessed = 4 * (x_flat.size + N * C * Mp + w1.size + w2.size
                          + b1.size + b2.size + mask.size)

    kernel = functools.partial(_tbasic_block_kernel, H=H, W=W, RS=RS, C=C)
    out_flat = pl.pallas_call(
        kernel,
        out_shape=jax.ShapeDtypeStruct((N, C, Mp), x_nchw.dtype),
        grid_spec=pltpu.PrefetchScalarGridSpec(
            num_scalar_prefetch=0,
            grid=(N,),
            in_specs=[
                pl.BlockSpec((1, C, Mp), lambda n: (n, 0, 0)),   # x (channel-major, dense)
                pl.BlockSpec((C, 18 * C), lambda n: (0, 0)),     # w1 (transposed, BN folded)
                pl.BlockSpec((C, 1), lambda n: (0, 0)),          # b1
                pl.BlockSpec((C, 18 * C), lambda n: (0, 0)),     # w2 (transposed, BN folded)
                pl.BlockSpec((C, 1), lambda n: (0, 0)),          # b2
                pl.BlockSpec((1, Mp), lambda n: (0, 0)),         # valid-column mask
            ],
            out_specs=pl.BlockSpec((1, C, Mp), lambda n: (n, 0, 0)),
            scratch_shapes=[
                pltpu.VMEM((C, FR), jnp.float32),                # flat halo-2 padded frame
                pltpu.VMEM((18 * C, Mp), jnp.float32),           # transposed im2col patch
            ],
        ),
        compiler_params=pltpu.CompilerParams(
            dimension_semantics=("parallel",),
            vmem_limit_bytes=32 * 1024 * 1024,
        ),
        cost_estimate=pl.CostEstimate(
            flops=flops, transcendentals=0, bytes_accessed=bytes_accessed),
    )(x_flat, w1, b1, w2, b2, mask)

    # Drop the pad columns and restore NCHW (pure XLA layout plumbing).
    return out_flat.reshape(N, C, H, RS)[:, :, :, :W]


# ---------------------------------------------------------------------------
# Pure-JAX reference (for correctness check)
# ---------------------------------------------------------------------------
def _ref_multi_dil_conv(x_nchw, w_oihw):
    Cout = w_oihw.shape[0]
    outs = []
    for d in (1, 2):
        outs.append(lax.conv_general_dilated(
            x_nchw, w_oihw, window_strides=(1, 1),
            padding=((d, d), (d, d)), rhs_dilation=(d, d),
            dimension_numbers=("NCHW", "OIHW", "NCHW"),
            precision=lax.Precision.HIGHEST))
    sel = (jnp.arange(Cout) % 2 == 0)[None, :, None, None]
    return jnp.where(sel, outs[0], outs[1])


def _ref_bn(x, bn, eps=1e-5):
    s = bn["gamma"] * lax.rsqrt(bn["var"] + eps)
    b = bn["beta"] - bn["mean"] * s
    return x * s[None, :, None, None] + b[None, :, None, None]


def _ref_lrelu(x):
    return jnp.where(x >= 0, x, 0.1 * x)


def ref_forward(x_nchw, params):
    out = _ref_lrelu(_ref_bn(_ref_multi_dil_conv(x_nchw, params["w1"]), params["bn1"]))
    out = _ref_bn(_ref_multi_dil_conv(out, params["w2"]), params["bn2"])
    return _ref_lrelu(out + x_nchw)


# ---------------------------------------------------------------------------
if __name__ == "__main__":
    key = jax.random.PRNGKey(0)
    kx, kp = jax.random.split(key)

    N, C, H, W = 2, 8, 16, 16          # in_planes = out_planes = 8, stride = 1
    x = jax.random.normal(kx, (N, C, H, W), jnp.float32)
    params = init_tbasicblock_params(kp, in_planes=C, out_planes=C)

    y = jax.block_until_ready(tbasic_block_forward(x, params))

    y_ref = ref_forward(x, params)
    assert y.shape == (N, C, H, W)
    if not bool(jnp.allclose(y, y_ref, rtol=5e-3, atol=5e-3)):
        raise AssertionError(
            f"mismatch: max abs diff = {float(jnp.max(jnp.abs(y - y_ref)))}")

    print("KERNEL_OK")
</pallas_src>

<mosaic_0001>
module attributes {stable_mosaic.version = 11 : i64} {
  func.func @_tbasic_block_kernel(%arg0: i32, %arg1: memref<1x8x384xf32, #tpu.memory_space<vmem>>, %arg2: memref<8x144xf32, #tpu.memory_space<vmem>>, %arg3: memref<8x1xf32, #tpu.memory_space<vmem>>, %arg4: memref<8x144xf32, #tpu.memory_space<vmem>>, %arg5: memref<8x1xf32, #tpu.memory_space<vmem>>, %arg6: memref<1x384xf32, #tpu.memory_space<vmem>>, %arg7: memref<1x8x384xf32, #tpu.memory_space<vmem>>, %arg8: memref<8x512xf32, #tpu.memory_space<vmem>>, %arg9: memref<144x384xf32, #tpu.memory_space<vmem>>) attributes {dimension_semantics = [#tpu.dimension_semantics<parallel>], iteration_bounds = array<i64: 2>, scalar_prefetch = 0 : i64, scratch_operands = 2 : i64, tpu.core_type = #tpu.core_type<tc>, window_params = [{transform_indices = @transform_0, window_bounds = array<i64: 1, 8, 384>}, {pipeline_mode = #tpu.pipeline_mode<synchronous>, transform_indices = @transform_1, window_bounds = array<i64: 8, 144>}, {pipeline_mode = #tpu.pipeline_mode<synchronous>, transform_indices = @transform_2, window_bounds = array<i64: 8, 1>}, {pipeline_mode = #tpu.pipeline_mode<synchronous>, transform_indices = @transform_3, window_bounds = array<i64: 8, 144>}, {pipeline_mode = #tpu.pipeline_mode<synchronous>, transform_indices = @transform_4, window_bounds = array<i64: 8, 1>}, {pipeline_mode = #tpu.pipeline_mode<synchronous>, transform_indices = @transform_5, window_bounds = array<i64: 1, 384>}, {transform_indices = @transform_6, window_bounds = array<i64: 1, 8, 384>}]} {
    %cst = arith.constant 0.000000e+00 : f32
    %0 = vector.broadcast %cst : f32 to vector<8x512xf32>
    %c0 = arith.constant 0 : index
    %c0_0 = arith.constant 0 : index
    %1 = vector.load %arg8[%c0, %c0_0] : memref<8x512xf32, #tpu.memory_space<vmem>>, vector<8x512xf32>
    tpu.vector_store %arg8[%c0, %c0_0], %0 {strides = array<i32>} : memref<8x512xf32, #tpu.memory_space<vmem>>, vector<8x512xf32>,
    %c0_1 = arith.constant 0 : index
    %c0_2 = arith.constant 0 : index
    %c0_3 = arith.constant 0 : index
    %2 = vector.load %arg1[%c0_1, %c0_2, %c0_3] : memref<1x8x384xf32, #tpu.memory_space<vmem>>, vector<1x8x384xf32>
    %3 = vector.shape_cast %2 : vector<1x8x384xf32> to vector<8x384xf32>
    %c0_4 = arith.constant 0 : index
    %c50 = arith.constant 50 : index
    %4 = vector.load %arg8[%c0_4, %c50] : memref<8x512xf32, #tpu.memory_space<vmem>>, vector<8x384xf32>
    tpu.vector_store %arg8[%c0_4, %c50], %3 {strides = array<i32>} : memref<8x512xf32, #tpu.memory_space<vmem>>, vector<8x384xf32>,
    %c0_5 = arith.constant 0 : index
    %c25 = arith.constant 25 : index
    %5 = vector.load %arg8[%c0_5, %c25] : memref<8x512xf32, #tpu.memory_space<vmem>>, vector<8x384xf32>
    %c0_6 = arith.constant 0 : index
    %c0_7 = arith.constant 0 : index
    %6 = vector.load %arg9[%c0_6, %c0_7] : memref<144x384xf32, #tpu.memory_space<vmem>>, vector<8x384xf32>
    tpu.vector_store %arg9[%c0_6, %c0_7], %5 {strides = array<i32>} : memref<144x384xf32, #tpu.memory_space<vmem>>, vector<8x384xf32>,
    %c0_8 = arith.constant 0 : index
    %c0_9 = arith.constant 0 : index
    %7 = vector.load %arg8[%c0_8, %c0_9] : memref<8x512xf32, #tpu.memory_space<vmem>>, vector<8x384xf32>
    %c8 = arith.constant 8 : index
    %c0_10 = arith.constant 0 : index
    %8 = vector.load %arg9[%c8, %c0_10] : memref<144x384xf32, #tpu.memory_space<vmem>>, vector<8x384xf32>
    tpu.vector_store %arg9[%c8, %c0_10], %7 {strides = array<i32>} : memref<144x384xf32, #tpu.memory_space<vmem>>, vector<8x384xf32>,
    %c0_11 = arith.constant 0 : index
    %c26 = arith.constant 26 : index
    %9 = vector.load %arg8[%c0_11, %c26] : memref<8x512xf32, #tpu.memory_space<vmem>>, vector<8x384xf32>
    %c16 = arith.constant 16 : index
    %c0_12 = arith.constant 0 : index
    %10 = vector.load %arg9[%c16, %c0_12] : memref<144x384xf32, #tpu.memory_space<vmem>>, vector<8x384xf32>
    tpu.vector_store %arg9[%c16, %c0_12], %9 {strides = array<i32>} : memref<144x384xf32, #tpu.memory_space<vmem>>, vector<8x384xf32>,
    %c0_13 = arith.constant 0 : index
    %c2 = arith.constant 2 : index
    %11 = vector.load %arg8[%c0_13, %c2] : memref<8x512xf32, #tpu.memory_space<vmem>>, vector<8x384xf32>
    %c24 = arith.constant 24 : index
    %c0_14 = arith.constant 0 : index
    %12 = vector.load %arg9[%c24, %c0_14] : memref<144x384xf32, #tpu.memory_space<vmem>>, vector<8x384xf32>
    tpu.vector_store %arg9[%c24, %c0_14], %11 {strides = array<i32>} : memref<144x384xf32, #tpu.memory_space<vmem>>, vector<8x384xf32>,
    %c0_15 = arith.constant 0 : index
    %c27 = arith.constant 27 : index
    %13 = vector.load %arg8[%c0_15, %c27] : memref<8x512xf32, #tpu.memory_space<vmem>>, vector<8x384xf32>
    %c32 = arith.constant 32 : index
    %c0_16 = arith.constant 0 : index
    %14 = vector.load %arg9[%c32, %c0_16] : memref<144x384xf32, #tpu.memory_space<vmem>>, vector<8x384xf32>
    tpu.vector_store %arg9[%c32, %c0_16], %13 {strides = array<i32>} : memref<144x384xf32, #tpu.memory_space<vmem>>, vector<8x384xf32>,
    %c0_17 = arith.constant 0 : index
    %c4 = arith.constant 4 : index
    %15 = vector.load %arg8[%c0_17, %c4] : memref<8x512xf32, #tpu.memory_space<vmem>>, vector<8x384xf32>
    %c40 = arith.constant 40 : index
    %c0_18 = arith.constant 0 : index
    %16 = vector.load %arg9[%c40, %c0_18] : memref<144x384xf32, #tpu.memory_space<vmem>>, vector<8x384xf32>
    tpu.vector_store %arg9[%c40, %c0_18], %15 {strides = array<i32>} : memref<144x384xf32, #tpu.memory_space<vmem>>, vector<8x384xf32>,
    %c0_19 = arith.constant 0 : index
    %c49 = arith.constant 49 : index
    %17 = vector.load %arg8[%c0_19, %c49] : memref<8x512xf32, #tpu.memory_space<vmem>>, vector<8x384xf32>
    %c48 = arith.constant 48 : index
    %c0_20 = arith.constant 0 : index
    %18 = vector.load %arg9[%c48, %c0_20] : memref<144x384xf32, #tpu.memory_space<vmem>>, vector<8x384xf32>
    tpu.vector_store %arg9[%c48, %c0_20], %17 {strides = array<i32>} : memref<144x384xf32, #tpu.memory_space<vmem>>, vector<8x384xf32>,
    %c0_21 = arith.constant 0 : index
    %c48_22 = arith.constant 48 : index
    %19 = vector.load %arg8[%c0_21, %c48_22] : memref<8x512xf32, #tpu.memory_space<vmem>>, vector<8x384xf32>
    %c56 = arith.constant 56 : index
    %c0_23 = arith.constant 0 : index
    %20 = vector.load %arg9[%c56, %c0_23] : memref<144x384xf32, #tpu.memory_space<vmem>>, vector<8x384xf32>
    tpu.vector_store %arg9[%c56, %c0_23], %19 {strides = array<i32>} : memref<144x384xf32, #tpu.memory_space<vmem>>, vector<8x384xf32>,
    %c0_24 = arith.constant 0 : index
    %c50_25 = arith.constant 50 : index
    %21 = vector.load %arg8[%c0_24, %c50_25] : memref<8x512xf32, #tpu.memory_space<vmem>>, vector<8x384xf32>
    %c64 = arith.constant 64 : index
    %c0_26 = arith.constant 0 : index
    %22 = vector.load %arg9[%c64, %c0_26] : memref<144x384xf32, #tpu.memory_space<vmem>>, vector<8x384xf32>
    tpu.vector_store %arg9[%c64, %c0_26], %21 {strides = array<i32>} : memref<144x384xf32, #tpu.memory_space<vmem>>, vector<8x384xf32>,
    %c0_27 = arith.constant 0 : index
    %c50_28 = arith.constant 50 : index
    %23 = vector.load %arg8[%c0_27, %c50_28] : memref<8x512xf32, #tpu.memory_space<vmem>>, vector<8x384xf32>
    %c72 = arith.constant 72 : index
    %c0_29 = arith.constant 0 : index
    %24 = vector.load %arg9[%c72, %c0_29] : memref<144x384xf32, #tpu.memory_space<vmem>>, vector<8x384xf32>
    tpu.vector_store %arg9[%c72, %c0_29], %23 {strides = array<i32>} : memref<144x384xf32, #tpu.memory_space<vmem>>, vector<8x384xf32>,
    %c0_30 = arith.constant 0 : index
    %c51 = arith.constant 51 : index
    %25 = vector.load %arg8[%c0_30, %c51] : memref<8x512xf32, #tpu.memory_space<vmem>>, vector<8x384xf32>
    %c80 = arith.constant 80 : index
    %c0_31 = arith.constant 0 : index
    %26 = vector.load %arg9[%c80, %c0_31] : memref<144x384xf32, #tpu.memory_space<vmem>>, vector<8x384xf32>
    tpu.vector_store %arg9[%c80, %c0_31], %25 {strides = array<i32>} : memref<144x384xf32, #tpu.memory_space<vmem>>, vector<8x384xf32>,
    %c0_32 = arith.constant 0 : index
    %c52 = arith.constant 52 : index
    %27 = vector.load %arg8[%c0_32, %c52] : memref<8x512xf32, #tpu.memory_space<vmem>>, vector<8x384xf32>
    %c88 = arith.constant 88 : index
    %c0_33 = arith.constant 0 : index
    %28 = vector.load %arg9[%c88, %c0_33] : memref<144x384xf32, #tpu.memory_space<vmem>>, vector<8x384xf32>
    tpu.vector_store %arg9[%c88, %c0_33], %27 {strides = array<i32>} : memref<144x384xf32, #tpu.memory_space<vmem>>, vector<8x384xf32>,
    %c0_34 = arith.constant 0 : index
    %c73 = arith.constant 73 : index
    %29 = vector.load %arg8[%c0_34, %c73] : memref<8x512xf32, #tpu.memory_space<vmem>>, vector<8x384xf32>
    %c96 = arith.constant 96 : index
    %c0_35 = arith.constant 0 : index
    %30 = vector.load %arg9[%c96, %c0_35] : memref<144x384xf32, #tpu.memory_space<vmem>>, vector<8x384xf32>
    tpu.vector_store %arg9[%c96, %c0_35], %29 {strides = array<i32>} : memref<144x384xf32, #tpu.memory_space<vmem>>, vector<8x384xf32>,
    %c0_36 = arith.constant 0 : index
    %c96_37 = arith.constant 96 : index
    %31 = vector.load %arg8[%c0_36, %c96_37] : memref<8x512xf32, #tpu.memory_space<vmem>>, vector<8x384xf32>
    %c104 = arith.constant 104 : index
    %c0_38 = arith.constant 0 : index
    %32 = vector.load %arg9[%c104, %c0_38] : memref<144x384xf32, #tpu.memory_space<vmem>>, vector<8x384xf32>
    tpu.vector_store %arg9[%c104, %c0_38], %31 {strides = array<i32>} : memref<144x384xf32, #tpu.memory_space<vmem>>, vector<8x384xf32>,
    %c0_39 = arith.constant 0 : index
    %c74 = arith.constant 74 : index
    %33 = vector.load %arg8[%c0_39, %c74] : memref<8x512xf32, #tpu.memory_space<vmem>>, vector<8x384xf32>
    %c112 = arith.constant 112 : index
    %c0_40 = arith.constant 0 : index
    %34 = vector.load %arg9[%c112, %c0_40] : memref<144x384xf32, #tpu.memory_space<vmem>>, vector<8x384xf32>
    tpu.vector_store %arg9[%c112, %c0_40], %33 {strides = array<i32>} : memref<144x384xf32, #tpu.memory_space<vmem>>, vector<8x384xf32>,
    %c0_41 = arith.constant 0 : index
    %c98 = arith.constant 98 : index
    %35 = vector.load %arg8[%c0_41, %c98] : memref<8x512xf32, #tpu.memory_space<vmem>>, vector<8x384xf32>
    %c120 = arith.constant 120 : index
    %c0_42 = arith.constant 0 : index
    %36 = vector.load %arg9[%c120, %c0_42] : memref<144x384xf32, #tpu.memory_space<vmem>>, vector<8x384xf32>
    tpu.vector_store %arg9[%c120, %c0_42], %35 {strides = array<i32>} : memref<144x384xf32, #tpu.memory_space<vmem>>, vector<8x384xf32>,
    %c0_43 = arith.constant 0 : index
    %c75 = arith.constant 75 : index
    %37 = vector.load %arg8[%c0_43, %c75] : memref<8x512xf32, #tpu.memory_space<vmem>>, vector<8x384xf32>
    %c128 = arith.constant 128 : index
    %c0_44 = arith.constant 0 : index
    %38 = vector.load %arg9[%c128, %c0_44] : memref<144x384xf32, #tpu.memory_space<vmem>>, vector<8x384xf32>
    tpu.vector_store %arg9[%c128, %c0_44], %37 {strides = array<i32>} : memref<144x384xf32, #tpu.memory_space<vmem>>, vector<8x384xf32>,
    %c0_45 = arith.constant 0 : index
    %c100 = arith.constant 100 : index
    %39 = vector.load %arg8[%c0_45, %c100] : memref<8x512xf32, #tpu.memory_space<vmem>>, vector<8x384xf32>
    %c136 = arith.constant 136 : index
    %c0_46 = arith.constant 0 : index
    %40 = vector.load %arg9[%c136, %c0_46] : memref<144x384xf32, #tpu.memory_space<vmem>>, vector<8x384xf32>
    tpu.vector_store %arg9[%c136, %c0_46], %39 {strides = array<i32>} : memref<144x384xf32, #tpu.memory_space<vmem>>, vector<8x384xf32>,
    %c0_47 = arith.constant 0 : index
    %c0_48 = arith.constant 0 : index
    %41 = vector.load %arg2[%c0_47, %c0_48] : memref<8x144xf32, #tpu.memory_space<vmem>>, vector<8x144xf32>
    %c0_49 = arith.constant 0 : index
    %c0_50 = arith.constant 0 : index
    %42 = vector.load %arg9[%c0_49, %c0_50] : memref<144x384xf32, #tpu.memory_space<vmem>>, vector<144x384xf32>
    %cst_51 = arith.constant dense<0.000000e+00> : vector<8x384xf32>
    %43 = tpu.matmul %41, %42, %cst_51 {dimension_numbers = #tpu.dot_dimension_numbers<[1], [0], [0], [1], [0, 0, 1, 1], [], []>} : vector<8x144xf32>, vector<144x384xf32>, vector<8x384xf32> -> vector<8x384xf32>
    %c0_52 = arith.constant 0 : index
    %c0_53 = arith.constant 0 : index
    %44 = vector.load %arg3[%c0_52, %c0_53] : memref<8x1xf32, #tpu.memory_space<vmem>>, vector<8x1xf32>
    %45 = vector.broadcast %44 : vector<8x1xf32> to vector<8x384xf32>
    %46 = arith.addf %43, %45 : vector<8x384xf32>
    %cst_54 = arith.constant 1.000000e-01 : f32
    %47 = vector.broadcast %cst_54 : f32 to vector<8x384xf32>
    %48 = arith.mulf %47, %46 : vector<8x384xf32>
    %49 = arith.maximumf %46, %48 : vector<8x384xf32>
    %c0_55 = arith.constant 0 : index
    %c0_56 = arith.constant 0 : index
    %50 = vector.load %arg6[%c0_55, %c0_56] : memref<1x384xf32, #tpu.memory_space<vmem>>, vector<1x384xf32>
    %51 = vector.broadcast %50 : vector<1x384xf32> to vector<8x384xf32>
    %52 = arith.mulf %49, %51 : vector<8x384xf32>
    %c0_57 = arith.constant 0 : index
    %c50_58 = arith.constant 50 : index
    %53 = vector.load %arg8[%c0_57, %c50_58] : memref<8x512xf32, #tpu.memory_space<vmem>>, vector<8x384xf32>
    tpu.vector_store %arg8[%c0_57, %c50_58], %52 {strides = array<i32>} : memref<8x512xf32, #tpu.memory_space<vmem>>, vector<8x384xf32>,
    %c0_59 = arith.constant 0 : index
    %c25_60 = arith.constant 25 : index
    %54 = vector.load %arg8[%c0_59, %c25_60] : memref<8x512xf32, #tpu.memory_space<vmem>>, vector<8x384xf32>
    %c0_61 = arith.constant 0 : index
    %c0_62 = arith.constant 0 : index
    %55 = vector.load %arg9[%c0_61, %c0_62] : memref<144x384xf32, #tpu.memory_space<vmem>>, vector<8x384xf32>
    tpu.vector_store %arg9[%c0_61, %c0_62], %54 {strides = array<i32>} : memref<144x384xf32, #tpu.memory_space<vmem>>, vector<8x384xf32>,
    %c0_63 = arith.constant 0 : index
    %c0_64 = arith.constant 0 : index
    %56 = vector.load %arg8[%c0_63, %c0_64] : memref<8x512xf32, #tpu.memory_space<vmem>>, vector<8x384xf32>
    %c8_65 = arith.constant 8 : index
    %c0_66 = arith.constant 0 : index
    %57 = vector.load %arg9[%c8_65, %c0_66] : memref<144x384xf32, #tpu.memory_space<vmem>>, vector<8x384xf32>
    tpu.vector_store %arg9[%c8_65, %c0_66], %56 {strides = array<i32>} : memref<144x384xf32, #tpu.memory_space<vmem>>, vector<8x384xf32>,
    %c0_67 = arith.constant 0 : index
    %c26_68 = arith.constant 26 : index
    %58 = vector.load %arg8[%c0_67, %c26_68] : memref<8x512xf32, #tpu.memory_space<vmem>>, vector<8x384xf32>
    %c16_69 = arith.constant 16 : index
    %c0_70 = arith.constant 0 : index
    %59 = vector.load %arg9[%c16_69, %c0_70] : memref<144x384xf32, #tpu.memory_space<vmem>>, vector<8x384xf32>
    tpu.vector_store %arg9[%c16_69, %c0_70], %58 {strides = array<i32>} : memref<144x384xf32, #tpu.memory_space<vmem>>, vector<8x384xf32>,
    %c0_71 = arith.constant 0 : index
    %c2_72 = arith.constant 2 : index
    %60 = vector.load %arg8[%c0_71, %c2_72] : memref<8x512xf32, #tpu.memory_space<vmem>>, vector<8x384xf32>
    %c24_73 = arith.constant 24 : index
    %c0_74 = arith.constant 0 : index
    %61 = vector.load %arg9[%c24_73, %c0_74] : memref<144x384xf32, #tpu.memory_space<vmem>>, vector<8x384xf32>
    tpu.vector_store %arg9[%c24_73, %c0_74], %60 {strides = array<i32>} : memref<144x384xf32, #tpu.memory_space<vmem>>, vector<8x384xf32>,
    %c0_75 = arith.constant 0 : index
    %c27_76 = arith.constant 27 : index
    %62 = vector.load %arg8[%c0_75, %c27_76] : memref<8x512xf32, #tpu.memory_space<vmem>>, vector<8x384xf32>
    %c32_77 = arith.constant 32 : index
    %c0_78 = arith.constant 0 : index
    %63 = vector.load %arg9[%c32_77, %c0_78] : memref<144x384xf32, #tpu.memory_space<vmem>>, vector<8x384xf32>
    tpu.vector_store %arg9[%c32_77, %c0_78], %62 {strides = array<i32>} : memref<144x384xf32, #tpu.memory_space<vmem>>, vector<8x384xf32>,
    %c0_79 = arith.constant 0 : index
    %c4_80 = arith.constant 4 : index
    %64 = vector.load %arg8[%c0_79, %c4_80] : memref<8x512xf32, #tpu.memory_space<vmem>>, vector<8x384xf32>
    %c40_81 = arith.constant 40 : index
    %c0_82 = arith.constant 0 : index
    %65 = vector.load %arg9[%c40_81, %c0_82] : memref<144x384xf32, #tpu.memory_space<vmem>>, vector<8x384xf32>
    tpu.vector_store %arg9[%c40_81, %c0_82], %64 {strides = array<i32>} : memref<144x384xf32, #tpu.memory_space<vmem>>, vector<8x384xf32>,
    %c0_83 = arith.constant 0 : index
    %c49_84 = arith.constant 49 : index
    %66 = vector.load %arg8[%c0_83, %c49_84] : memref<8x512xf32, #tpu.memory_space<vmem>>, vector<8x384xf32>
    %c48_85 = arith.constant 48 : index
    %c0_86 = arith.constant 0 : index
    %67 = vector.load %arg9[%c48_85, %c0_86] : memref<144x384xf32, #tpu.memory_space<vmem>>, vector<8x384xf32>
    tpu.vector_store %arg9[%c48_85, %c0_86], %66 {strides = array<i32>} : memref<144x384xf32, #tpu.memory_space<vmem>>, vector<8x384xf32>,
    %c0_87 = arith.constant 0 : index
    %c48_88 = arith.constant 48 : index
    %68 = vector.load %arg8[%c0_87, %c48_88] : memref<8x512xf32, #tpu.memory_space<vmem>>, vector<8x384xf32>
    %c56_89 = arith.constant 56 : index
    %c0_90 = arith.constant 0 : index
    %69 = vector.load %arg9[%c56_89, %c0_90] : memref<144x384xf32, #tpu.memory_space<vmem>>, vector<8x384xf32>
    tpu.vector_store %arg9[%c56_89, %c0_90], %68 {strides = array<i32>} : memref<144x384xf32, #tpu.memory_space<vmem>>, vector<8x384xf32>,
    %c0_91 = arith.constant 0 : index
    %c50_92 = arith.constant 50 : index
    %70 = vector.load %arg8[%c0_91, %c50_92] : memref<8x512xf32, #tpu.memory_space<vmem>>, vector<8x384xf32>
    %c64_93 = arith.constant 64 : index
    %c0_94 = arith.constant 0 : index
    %71 = vector.load %arg9[%c64_93, %c0_94] : memref<144x384xf32, #tpu.memory_space<vmem>>, vector<8x384xf32>
    tpu.vector_store %arg9[%c64_93, %c0_94], %70 {strides = array<i32>} : memref<144x384xf32, #tpu.memory_space<vmem>>, vector<8x384xf32>,
    %c0_95 = arith.constant 0 : index
    %c50_96 = arith.constant 50 : index
    %72 = vector.load %arg8[%c0_95, %c50_96] : memref<8x512xf32, #tpu.memory_space<vmem>>, vector<8x384xf32>
    %c72_97 = arith.constant 72 : index
    %c0_98 = arith.constant 0 : index
    %73 = vector.load %arg9[%c72_97, %c0_98] : memref<144x384xf32, #tpu.memory_space<vmem>>, vector<8x384xf32>
    tpu.vector_store %arg9[%c72_97, %c0_98], %72 {strides = array<i32>} : memref<144x384xf32, #tpu.memory_space<vmem>>, vector<8x384xf32>,
    %c0_99 = arith.constant 0 : index
    %c51_100 = arith.constant 51 : index
    %74 = vector.load %arg8[%c0_99, %c51_100] : memref<8x512xf32, #tpu.memory_space<vmem>>, vector<8x384xf32>
    %c80_101 = arith.constant 80 : index
    %c0_102 = arith.constant 0 : index
    %75 = vector.load %arg9[%c80_101, %c0_102] : memref<144x384xf32, #tpu.memory_space<vmem>>, vector<8x384xf32>
    tpu.vector_store %arg9[%c80_101, %c0_102], %74 {strides = array<i32>} : memref<144x384xf32, #tpu.memory_space<vmem>>, vector<8x384xf32>,
    %c0_103 = arith.constant 0 : index
    %c52_104 = arith.constant 52 : index
    %76 = vector.load %arg8[%c0_103, %c52_104] : memref<8x512xf32, #tpu.memory_space<vmem>>, vector<8x384xf32>
    %c88_105 = arith.constant 88 : index
    %c0_106 = arith.constant 0 : index
    %77 = vector.load %arg9[%c88_105, %c0_106] : memref<144x384xf32, #tpu.memory_space<vmem>>, vector<8x384xf32>
    tpu.vector_store %arg9[%c88_105, %c0_106], %76 {strides = array<i32>} : memref<144x384xf32, #tpu.memory_space<vmem>>, vector<8x384xf32>,
    %c0_107 = arith.constant 0 : index
    %c73_108 = arith.constant 73 : index
    %78 = vector.load %arg8[%c0_107, %c73_108] : memref<8x512xf32, #tpu.memory_space<vmem>>, vector<8x384xf32>
    %c96_109 = arith.constant 96 : index
    %c0_110 = arith.constant 0 : index
    %79 = vector.load %arg9[%c96_109, %c0_110] : memref<144x384xf32, #tpu.memory_space<vmem>>, vector<8x384xf32>
    tpu.vector_store %arg9[%c96_109, %c0_110], %78 {strides = array<i32>} : memref<144x384xf32, #tpu.memory_space<vmem>>, vector<8x384xf32>,
    %c0_111 = arith.constant 0 : index
    %c96_112 = arith.constant 96 : index
    %80 = vector.load %arg8[%c0_111, %c96_112] : memref<8x512xf32, #tpu.memory_space<vmem>>, vector<8x384xf32>
    %c104_113 = arith.constant 104 : index
    %c0_114 = arith.constant 0 : index
    %81 = vector.load %arg9[%c104_113, %c0_114] : memref<144x384xf32, #tpu.memory_space<vmem>>, vector<8x384xf32>
    tpu.vector_store %arg9[%c104_113, %c0_114], %80 {strides = array<i32>} : memref<144x384xf32, #tpu.memory_space<vmem>>, vector<8x384xf32>,
    %c0_115 = arith.constant 0 : index
    %c74_116 = arith.constant 74 : index
    %82 = vector.load %arg8[%c0_115, %c74_116] : memref<8x512xf32, #tpu.memory_space<vmem>>, vector<8x384xf32>
    %c112_117 = arith.constant 112 : index
    %c0_118 = arith.constant 0 : index
    %83 = vector.load %arg9[%c112_117, %c0_118] : memref<144x384xf32, #tpu.memory_space<vmem>>, vector<8x384xf32>
    tpu.vector_store %arg9[%c112_117, %c0_118], %82 {strides = array<i32>} : memref<144x384xf32, #tpu.memory_space<vmem>>, vector<8x384xf32>,
    %c0_119 = arith.constant 0 : index
    %c98_120 = arith.constant 98 : index
    %84 = vector.load %arg8[%c0_119, %c98_120] : memref<8x512xf32, #tpu.memory_space<vmem>>, vector<8x384xf32>
    %c120_121 = arith.constant 120 : index
    %c0_122 = arith.constant 0 : index
    %85 = vector.load %arg9[%c120_121, %c0_122] : memref<144x384xf32, #tpu.memory_space<vmem>>, vector<8x384xf32>
    tpu.vector_store %arg9[%c120_121, %c0_122], %84 {strides = array<i32>} : memref<144x384xf32, #tpu.memory_space<vmem>>, vector<8x384xf32>,
    %c0_123 = arith.constant 0 : index
    %c75_124 = arith.constant 75 : index
    %86 = vector.load %arg8[%c0_123, %c75_124] : memref<8x512xf32, #tpu.memory_space<vmem>>, vector<8x384xf32>
    %c128_125 = arith.constant 128 : index
    %c0_126 = arith.constant 0 : index
    %87 = vector.load %arg9[%c128_125, %c0_126] : memref<144x384xf32, #tpu.memory_space<vmem>>, vector<8x384xf32>
    tpu.vector_store %arg9[%c128_125, %c0_126], %86 {strides = array<i32>} : memref<144x384xf32, #tpu.memory_space<vmem>>, vector<8x384xf32>,
    %c0_127 = arith.constant 0 : index
    %c100_128 = arith.constant 100 : index
    %88 = vector.load %arg8[%c0_127, %c100_128] : memref<8x512xf32, #tpu.memory_space<vmem>>, vector<8x384xf32>
    %c136_129 = arith.constant 136 : index
    %c0_130 = arith.constant 0 : index
    %89 = vector.load %arg9[%c136_129, %c0_130] : memref<144x384xf32, #tpu.memory_space<vmem>>, vector<8x384xf32>
    tpu.vector_store %arg9[%c136_129, %c0_130], %88 {strides = array<i32>} : memref<144x384xf32, #tpu.memory_space<vmem>>, vector<8x384xf32>,
    %c0_131 = arith.constant 0 : index
    %c0_132 = arith.constant 0 : index
    %90 = vector.load %arg4[%c0_131, %c0_132] : memref<8x144xf32, #tpu.memory_space<vmem>>, vector<8x144xf32>
    %c0_133 = arith.constant 0 : index
    %c0_134 = arith.constant 0 : index
    %91 = vector.load %arg9[%c0_133, %c0_134] : memref<144x384xf32, #tpu.memory_space<vmem>>, vector<144x384xf32>
    %cst_135 = arith.constant dense<0.000000e+00> : vector<8x384xf32>
    %92 = tpu.matmul %90, %91, %cst_135 {dimension_numbers = #tpu.dot_dimension_numbers<[1], [0], [0], [1], [0, 0, 1, 1], [], []>} : vector<8x144xf32>, vector<144x384xf32>, vector<8x384xf32> -> vector<8x384xf32>
    %c0_136 = arith.constant 0 : index
    %c0_137 = arith.constant 0 : index
    %93 = vector.load %arg5[%c0_136, %c0_137] : memref<8x1xf32, #tpu.memory_space<vmem>>, vector<8x1xf32>
    %94 = vector.broadcast %93 : vector<8x1xf32> to vector<8x384xf32>
    %95 = arith.addf %92, %94 : vector<8x384xf32>
    %c0_138 = arith.constant 0 : index
    %c0_139 = arith.constant 0 : index
    %c0_140 = arith.constant 0 : index
    %96 = vector.load %arg1[%c0_138, %c0_139, %c0_140] : memref<1x8x384xf32, #tpu.memory_space<vmem>>, vector<1x8x384xf32>
    %97 = vector.shape_cast %96 : vector<1x8x384xf32> to vector<8x384xf32>
    %98 = arith.addf %95, %97 : vector<8x384xf32>
    %cst_141 = arith.constant 1.000000e-01 : f32
    %99 = vector.broadcast %cst_141 : f32 to vector<8x384xf32>
    %100 = arith.mulf %99, %98 : vector<8x384xf32>
    %101 = arith.maximumf %98, %100 : vector<8x384xf32>
    %102 = vector.shape_cast %101 : vector<8x384xf32> to vector<1x8x384xf32>
    %c0_142 = arith.constant 0 : index
    %c0_143 = arith.constant 0 : index
    %c0_144 = arith.constant 0 : index
    %103 = vector.load %arg7[%c0_142, %c0_143, %c0_144] : memref<1x8x384xf32, #tpu.memory_space<vmem>>, vector<1x8x384xf32>
    tpu.vector_store %arg7[%c0_142, %c0_143, %c0_144], %102 {strides = array<i32>} : memref<1x8x384xf32, #tpu.memory_space<vmem>>, vector<1x8x384xf32>,
    return
  }
  func.func @transform_0(%arg0: i32) -> (i32, i32, i32) {
    %c0_i32 = arith.constant 0 : i32
    %c0_i32_0 = arith.constant 0 : i32
    %c0_i32_1 = arith.constant 0 : i32
    return %arg0, %c0_i32, %c0_i32_0 : i32, i32, i32
  }
  func.func @transform_1(%arg0: i32) -> (i32, i32) {
    %c0_i32 = arith.constant 0 : i32
    %c0_i32_0 = arith.constant 0 : i32
    %c0_i32_1 = arith.constant 0 : i32
    return %c0_i32, %c0_i32_0 : i32, i32
  }
  func.func @transform_2(%arg0: i32) -> (i32, i32) {
    %c0_i32 = arith.constant 0 : i32
    %c0_i32_0 = arith.constant 0 : i32
    %c0_i32_1 = arith.constant 0 : i32
    return %c0_i32, %c0_i32_0 : i32, i32
  }
  func.func @transform_3(%arg0: i32) -> (i32, i32) {
    %c0_i32 = arith.constant 0 : i32
    %c0_i32_0 = arith.constant 0 : i32
    %c0_i32_1 = arith.constant 0 : i32
    return %c0_i32, %c0_i32_0 : i32, i32
  }
  func.func @transform_4(%arg0: i32) -> (i32, i32) {
    %c0_i32 = arith.constant 0 : i32
    %c0_i32_0 = arith.constant 0 : i32
    %c0_i32_1 = arith.constant 0 : i32
    return %c0_i32, %c0_i32_0 : i32, i32
  }
  func.func @transform_5(%arg0: i32) -> (i32, i32) {
    %c0_i32 = arith.constant 0 : i32
    %c0_i32_0 = arith.constant 0 : i32
    %c0_i32_1 = arith.constant 0 : i32
    return %c0_i32, %c0_i32_0 : i32, i32
  }
  func.func @transform_6(%arg0: i32) -> (i32, i32, i32) {
    %c0_i32 = arith.constant 0 : i32
    %c0_i32_0 = arith.constant 0 : i32
    %c0_i32_1 = arith.constant 0 : i32
    return %arg0, %c0_i32, %c0_i32_0 : i32, i32, i32
  }
}

</mosaic_0001>

<llo_original>
// kernel: tile.8
$region0: #{tile.8}
  #allocation0 [shape = 's32[1]{0}', space=sflag, size = 0x4, scoped, tag = 'scoped memory for tile.8']
  %s0 = inlined_call_operand.vmem [shape: f32[24], index: 0, kind: input, shape index: {}]
  %s1 = inlined_call_operand.vmem [shape: f32[16,24], index: 1, kind: output, shape index: {}]
  // Predicated region
  $region2: #{tile.8} parent=0 // pred_check
    _
  $region3: #{tile.8} parent=0 // pred_check_branch
    %3 = sbr.rel (0) target = $region5
  $region4: #{tile.8} parent=0 // pred_region
    _
  $region5: #{tile.8} parent=0 // pred_fallthru
    _
  %v4 = vld [vmem:[%s0] ss:$0 sm:$0xff]
  %5 = vst [vmem:[%s1] sm:$0xff] %v4
  %s6 = scalar_lea.vmem %s1, 8
  %7 = vst [vmem:[%s6] sm:$0xff] %v4

// kernel: tile.9
$region0: #{tile.9}
  %s0 = inlined_call_operand.vmem [shape: f32[16,24], index: 0, kind: input, shape index: {}]
  %s1 = inlined_call_operand.vmem [shape: f32[1,384], index: 1, kind: output, shape index: {}]
  $region1: #{tile.9} parent=0
    #allocation0 [shape = 'u8[12288]{0}', space=vmem, size = 0x3000, scoped, tag = 'scoped mem for output reshape']
    %v2 = vld [vmem:[%s0] sm:$0x1]
    %vm3 = vcmask 195584
    %4 = vst.msk [vmem:[#allocation0] sm:$0x1] %vm3, %v2
    %s5 = scalar_lea.vmem %s0, 5
    %v6 = vld [vmem:[%s5] sm:$0x1]
    %s7 = scalar_lea.vmem %s0, 5
    %v8 = vld [vmem:[%s7] sm:$0x1]
    %vm9 = vcmask 64512
    %v10 = vsel %vm9, %v8, %v6
    %11 = vrot.lane.b32.xlu0 %v10, 120
    %v12 = vpop.permute.xlu0 %11
    %vm13 = vcmask 130048
    %s14 = scalar_lea.vmem [#allocation0], 8
    %15 = vst.msk [vmem:[%s14] sm:$0x1] %vm13, %v12
    %vm16 = vcmask 1048512
    %17 = vst.msk [vmem:[#allocation0] sm:$0x1] %vm16, %v12
    %s18 = scalar_lea.vmem %s0, 10
    %v19 = vld [vmem:[%s18] sm:$0x1]
    %s20 = scalar_lea.vmem %s0, 10
    %v21 = vld [vmem:[%s20] sm:$0x1]
    %vm22 = vcmask 130048
    %v23 = vsel %vm22, %v21, %v19
    %24 = vrot.lane.b32.xlu0 %v23, 112
    %v25 = vpop.permute.xlu0 %24
    %vm26 = vcmask 64512
    %s27 = scalar_lea.vmem [#allocation0], 16
    %28 = vst.msk [vmem:[%s27] sm:$0x1] %vm26, %v25
    %vm29 = vcmask 1048448
    %s30 = scalar_lea.vmem [#allocation0], 8
    %31 = vst.msk [vmem:[%s30] sm:$0x1] %vm29, %v25
    %s32 = scalar_lea.vmem %s0, 15
    %v33 = vld [vmem:[%s32] sm:$0x1]
    %34 = vrot.lane.b32.xlu0 %v33, 104
    %v35 = vpop.permute.xlu0 %34
    %vm36 = vcmask 1048384
    %s37 = scalar_lea.vmem [#allocation0], 16
    %38 = vst.msk [vmem:[%s37] sm:$0x1] %vm36, %v35
    %s39 = scalar_lea.vmem %s0, 4
    %v40 = vld [vmem:[%s39] sm:$0x1]
    %41 = vrot.lane.b32.xlu0 %v40, 96
    %v42 = vpop.permute.xlu0 %41
    %vm43 = vcmask 982784
    %44 = vst.msk [vmem:[#allocation0] sm:$0x1] %vm43, %v42
    %s45 = scalar_lea.vmem %s0, 9
    %v46 = vld [vmem:[%s45] sm:$0x1]
    %47 = vrot.lane.b32.xlu0 %v46, 88
    %v48 = vpop.permute.xlu0 %47
    %vm49 = vcmask 917184
    %s50 = scalar_lea.vmem [#allocation0], 8
    %51 = vst.msk [vmem:[%s50] sm:$0x1] %vm49, %v48
    %s52 = scalar_lea.vmem %s0, 14
    %v53 = vld [vmem:[%s52] sm:$0x1]
    %54 = vrot.lane.b32.xlu0 %v53, 80
    %v55 = vpop.permute.xlu0 %54
    %vm56 = vcmask 851584
    %s57 = scalar_lea.vmem [#allocation0], 16
    %58 = vst.msk [vmem:[%s57] sm:$0x1] %vm56, %v55
    %s59 = scalar_lea.vmem %s0, 3
    %v60 = vld [vmem:[%s59] sm:$0x1]
    %61 = vrot.lane.b32.xlu0 %v60, 72
    %v62 = vpop.permute.xlu0 %61
    %vm63 = vcmask 785984
    %64 = vst.msk [vmem:[#allocation0] sm:$0x1] %vm63, %v62
    %s65 = scalar_lea.vmem %s0, 8
    %v66 = vld [vmem:[%s65] sm:$0x1]
    %67 = vrot.lane.b32.xlu0 %v66, 64
    %v68 = vpop.permute.xlu0 %67
    %vm69 = vcmask 720384
    %s70 = scalar_lea.vmem [#allocation0], 8
    %71 = vst.msk [vmem:[%s70] sm:$0x1] %vm69, %v68
    %s72 = scalar_lea.vmem %s0, 13
    %v73 = vld [vmem:[%s72] sm:$0x1]
    %74 = vrot.lane.b32.xlu0 %v73, 56
    %v75 = vpop.permute.xlu0 %74
    %vm76 = vcmask 654784
    %s77 = scalar_lea.vmem [#allocation0], 16
    %78 = vst.msk [vmem:[%s77] sm:$0x1] %vm76, %v75
    %s79 = scalar_lea.vmem %s0, 2
    %v80 = vld [vmem:[%s79] sm:$0x1]
    %81 = vrot.lane.b32.xlu0 %v80, 48
    %v82 = vpop.permute.xlu0 %81
    %vm83 = vcmask 589184
    %84 = vst.msk [vmem:[#allocation0] sm:$0x1] %vm83, %v82
    %s85 = scalar_lea.vmem %s0, 7
    %v86 = vld [vmem:[%s85] sm:$0x1]
    %87 = vrot.lane.b32.xlu0 %v86, 40
    %v88 = vpop.permute.xlu0 %87
    %vm89 = vcmask 523584
    %s90 = scalar_lea.vmem [#allocation0], 8
    %91 = vst.msk [vmem:[%s90] sm:$0x1] %vm89, %v88
    %s92 = scalar_lea.vmem %s0, 12
    %v93 = vld [vmem:[%s92] sm:$0x1]
    %94 = vrot.lane.b32.xlu0 %v93, 32
    %v95 = vpop.permute.xlu0 %94
    %vm96 = vcmask 457984
    %s97 = scalar_lea.vmem [#allocation0], 16
    %98 = vst.msk [vmem:[%s97] sm:$0x1] %vm96, %v95
    %s99 = scalar_lea.vmem %s0, 1
    %v100 = vld [vmem:[%s99] sm:$0x1]
    %101 = vrot.lane.b32.xlu0 %v100, 24
    %v102 = vpop.permute.xlu0 %101
    %vm103 = vcmask 392384
    %104 = vst.msk [vmem:[#allocation0] sm:$0x1] %vm103, %v102
    %s105 = scalar_lea.vmem %s0, 6
    %v106 = vld [vmem:[%s105] sm:$0x1]
    %107 = vrot.lane.b32.xlu0 %v106, 16
    %v108 = vpop.permute.xlu0 %107
    %vm109 = vcmask 326784
    %s110 = scalar_lea.vmem [#allocation0], 8
    %111 = vst.msk [vmem:[%s110] sm:$0x1] %vm109, %v108
    %s112 = scalar_lea.vmem %s0, 11
    %v113 = vld [vmem:[%s112] sm:$0x1]
    %114 = vrot.lane.b32.xlu0 %v113, 8
    %v115 = vpop.permute.xlu0 %114
    %vm116 = vcmask 261184
    %s117 = scalar_lea.vmem [#allocation0], 16
    %118 = vst.msk [vmem:[%s117] sm:$0x1] %vm116, %v115
    %s120 = sshll.u32 1, 1
    %s121 = ssub.s32 %s120, 1
    %v123 = vld [vmem:[#allocation0] sm:%s121]
    %s124 = sshll.u32 1, 1
    %s125 = ssub.s32 %s124, 1
    %126 = vst [vmem:[%s1] sm:%s125] %v123
    %s127 = scalar_lea.vmem [#allocation0], 8
    %v128 = vld [vmem:[%s127] sm:%s121]
    %s129 = sshll.u32 1, 1
    %s130 = ssub.s32 %s129, 1
    %s131 = scalar_lea.vmem %s1, 1
    %132 = vst [vmem:[%s131] sm:%s130] %v128
    %s133 = scalar_lea.vmem [#allocation0], 16
    %v134 = vld [vmem:[%s133] sm:%s121]
    %s135 = sshll.u32 1, 1
    %s136 = ssub.s32 %s135, 1
    %s137 = smul.addr 1, 2
    %s138 = scalar_lea.vmem %s1, %s137
    %139 = vst [vmem:[%s138] sm:%s136] %v134

// kernel: tbasic_block_forward.1
$region0: #{tbasic_block_forward.1}
  #allocation0 [shape = 'u32[]', space=smem, size = 0x4, offset = 0x4, fixed_abs, tag = 'smem constant byte address 0x4 - core index']
  #allocation1 [shape = 'u32[144,128]{1,0:T(1,128)}', space=vmem, size = 0x12000, scoped, tag = 'internal scratch']
  #allocation2 [shape = 'f32[8,512]{1,0:T(8,128)}', space=vmem, size = 0x4000, scoped, tag = 'scratch operand']
  #allocation3 [shape = 'f32[144,384]{1,0:T(8,128)}', space=vmem, size = 0x36000, scoped, tag = 'scratch operand']
  %s0 = inlined_call_operand.vmem [shape: f32[2,8,384], index: 0, kind: input, shape index: {}]
  %s1 = inlined_call_operand.vmem [shape: f32[8,144], index: 1, kind: input, shape index: {}]
  %s2 = inlined_call_operand.vmem [shape: f32[8,1], index: 2, kind: input, shape index: {}]
  %s3 = inlined_call_operand.vmem [shape: f32[8,144], index: 3, kind: input, shape index: {}]
  %s4 = inlined_call_operand.vmem [shape: f32[8,1], index: 4, kind: input, shape index: {}]
  %s5 = inlined_call_operand.vmem [shape: f32[1,384], index: 5, kind: input, shape index: {}]
  %s6 = inlined_call_operand.vmem [shape: f32[2,8,384], index: 6, kind: output, shape index: {}]
  %s7 = sld [smem:[#allocation0]]
  $region57: #{tbasic_block_forward.1} parent=0
    _
  %s9 = ssub.s32 1, %s7
  %s10 = scalar_select 0, %s9, %s7
  loop: start=0, step=1, limit=4
  $region2: #{tbasic_block_forward.1} parent=0 // loop_pre_header
    _
  $region3: #{tbasic_block_forward.1} parent=0 // loop_header
    %s12 = sphi 0, %s16
    %p13 = scmp.ge.s32.totalorder %s12, 4
    %s22 = sphi 0, %s24
    %s25 = sphi 0, %s22
    %s26 = sphi 0, %s25
    %s42 = sphi 0, %s26
    %s46 = sphi 0, %s46
    %s48 = sphi 0, %s46
    %s49 = sphi 0, %s48
    %s63 = sphi 0, %s49
    %s67 = sphi 0, %s67
    %s69 = sphi 0, %s67
    %s70 = sphi 0, %s69
    %s84 = sphi 0, %s70
    %s88 = sphi 0, %s88
    %s90 = sphi 0, %s88
    %s91 = sphi 0, %s90
    %s105 = sphi 0, %s91
    %s109 = sphi 0, %s109
    %s111 = sphi 0, %s109
    %s112 = sphi 0, %s111
    %s126 = sphi 0, %s112
    %s130 = sphi 0, %s130
    %s132 = sphi 0, %s130
    %s133 = sphi 0, %s132
    %s147 = sphi 0, %s133
    %s153 = sphi 0, %s155
    %s156 = sphi 0, %s153
    %s157 = sphi 0, %s156
    %s173 = sphi 0, %s157
  $region4: #{tbasic_block_forward.1} parent=0 // loop_header_branch
    %15 = sbr.rel (%p13) target = $region8
  $region5: #{tbasic_block_forward.1} parent=0 // loop_body
    %s17 = ssub.s32 %s12, 1
    %s18 = ssub.s32 %s12, 2
    %s19 = sadd.s32 %s12, 1
    %s20 = ssub.s32 %s12, %s19
    %p21 = scmp.eq.s32.totalorder %s20, 0
    %s23 = sadd.s32 %s22, 1
    %s24 = scalar_select %p21, %s22, %s23
    %p27 = pneg %p21
    %p28 = scmp.eq.s32.totalorder %s12, 1
    %p29 = por %p27, %p28
    %p30 = scmp.ne.s32.totalorder %s22, %s25
    %p31 = scmp.eq.s32.totalorder %s12, 0
    %p32 = por %p30, %p31
    %p33 = scmp.ne.s32.totalorder %s22, %s25
    %p34 = scmp.eq.s32.totalorder %s17, 1
    %p35 = por %p33, %p34
    %p36 = scmp.ne.s32.totalorder %s25, %s26
    %p37 = scmp.eq.s32.totalorder %s17, 0
    %p38 = por %p36, %p37
    %p39 = scmp.ne.s32.totalorder %s25, %s26
    %p40 = scmp.eq.s32.totalorder %s18, 1
    %p41 = por %p39, %p40
    %p43 = scmp.ne.s32.totalorder %s26, %s42
    %p44 = scmp.eq.s32.totalorder %s18, 0
    %p45 = por %p43, %p44
    %s47 = sadd.s32 %s46, 1
    %p50 = scmp.eq.s32.totalorder %s12, 1
    %p51 = scmp.ne.s32.totalorder %s46, %s48
    %p52 = scmp.eq.s32.totalorder %s12, 0
    %p53 = por %p51, %p52
    %p54 = scmp.ne.s32.totalorder %s46, %s48
    %p55 = scmp.eq.s32.totalorder %s17, 1
    %p56 = por %p54, %p55
    %p57 = scmp.ne.s32.totalorder %s48, %s49
    %p58 = scmp.eq.s32.totalorder %s17, 0
    %p59 = por %p57, %p58
    %p60 = scmp.ne.s32.totalorder %s48, %s49
    %p61 = scmp.eq.s32.totalorder %s18, 1
    %p62 = por %p60, %p61
    %p64 = scmp.ne.s32.totalorder %s49, %s63
    %p65 = scmp.eq.s32.totalorder %s18, 0
    %p66 = por %p64, %p65
    %s68 = sadd.s32 %s67, 1
    %p71 = scmp.eq.s32.totalorder %s12, 1
    %p72 = scmp.ne.s32.totalorder %s67, %s69
    %p73 = scmp.eq.s32.totalorder %s12, 0
    %p74 = por %p72, %p73
    %p75 = scmp.ne.s32.totalorder %s67, %s69
    %p76 = scmp.eq.s32.totalorder %s17, 1
    %p77 = por %p75, %p76
    %p78 = scmp.ne.s32.totalorder %s69, %s70
    %p79 = scmp.eq.s32.totalorder %s17, 0
    %p80 = por %p78, %p79
    %p81 = scmp.ne.s32.totalorder %s69, %s70
    %p82 = scmp.eq.s32.totalorder %s18, 1
    %p83 = por %p81, %p82
    %p85 = scmp.ne.s32.totalorder %s70, %s84
    %p86 = scmp.eq.s32.totalorder %s18, 0
    %p87 = por %p85, %p86
    %s89 = sadd.s32 %s88, 1
    %p92 = scmp.eq.s32.totalorder %s12, 1
    %p93 = scmp.ne.s32.totalorder %s88, %s90
    %p94 = scmp.eq.s32.totalorder %s12, 0
    %p95 = por %p93, %p94
    %p96 = scmp.ne.s32.totalorder %s88, %s90
    %p97 = scmp.eq.s32.totalorder %s17, 1
    %p98 = por %p96, %p97
    %p99 = scmp.ne.s32.totalorder %s90, %s91
    %p100 = scmp.eq.s32.totalorder %s17, 0
    %p101 = por %p99, %p100
    %p102 = scmp.ne.s32.totalorder %s90, %s91
    %p103 = scmp.eq.s32.totalorder %s18, 1
    %p104 = por %p102, %p103
    %p106 = scmp.ne.s32.totalorder %s91, %s105
    %p107 = scmp.eq.s32.totalorder %s18, 0
    %p108 = por %p106, %p107
    %s110 = sadd.s32 %s109, 1
    %p113 = scmp.eq.s32.totalorder %s12, 1
    %p114 = scmp.ne.s32.totalorder %s109, %s111
    %p115 = scmp.eq.s32.totalorder %s12, 0
    %p116 = por %p114, %p115
    %p117 = scmp.ne.s32.totalorder %s109, %s111
    %p118 = scmp.eq.s32.totalorder %s17, 1
    %p119 = por %p117, %p118
    %p120 = scmp.ne.s32.totalorder %s111, %s112
    %p121 = scmp.eq.s32.totalorder %s17, 0
    %p122 = por %p120, %p121
    %p123 = scmp.ne.s32.totalorder %s111, %s112
    %p124 = scmp.eq.s32.totalorder %s18, 1
    %p125 = por %p123, %p124
    %p127 = scmp.ne.s32.totalorder %s112, %s126
    %p128 = scmp.eq.s32.totalorder %s18, 0
    %p129 = por %p127, %p128
    %s131 = sadd.s32 %s130, 1
    %p134 = scmp.eq.s32.totalorder %s12, 1
    %p135 = scmp.ne.s32.totalorder %s130, %s132
    %p136 = scmp.eq.s32.totalorder %s12, 0
    %p137 = por %p135, %p136
    %p138 = scmp.ne.s32.totalorder %s130, %s132
    %p139 = scmp.eq.s32.totalorder %s17, 1
    %p140 = por %p138, %p139
    %p141 = scmp.ne.s32.totalorder %s132, %s133
    %p142 = scmp.eq.s32.totalorder %s17, 0
    %p143 = por %p141, %p142
    %p144 = scmp.ne.s32.totalorder %s132, %s133
    %p145 = scmp.eq.s32.totalorder %s18, 1
    %p146 = por %p144, %p145
    %p148 = scmp.ne.s32.totalorder %s133, %s147
    %p149 = scmp.eq.s32.totalorder %s18, 0
    %p150 = por %p148, %p149
    %s151 = ssub.s32 %s12, %s19
    %p152 = scmp.eq.s32.totalorder %s151, 0
    %s154 = sadd.s32 %s153, 1
    %s155 = scalar_select %p152, %s153, %s154
    %p158 = pneg %p152
    %p159 = scmp.eq.s32.totalorder %s12, 1
    %p160 = por %p158, %p159
    %p161 = scmp.ne.s32.totalorder %s153, %s156
    %p162 = scmp.eq.s32.totalorder %s12, 0
    %p163 = por %p161, %p162
    %p164 = scmp.ne.s32.totalorder %s153, %s156
    %p165 = scmp.eq.s32.totalorder %s17, 1
    %p166 = por %p164, %p165
    %p167 = scmp.ne.s32.totalorder %s156, %s157
    %p168 = scmp.eq.s32.totalorder %s17, 0
    %p169 = por %p167, %p168
    %p170 = scmp.ne.s32.totalorder %s156, %s157
    %p171 = scmp.eq.s32.totalorder %s18, 1
    %p172 = por %p170, %p171
    %p174 = scmp.ne.s32.totalorder %s157, %s173
    %p175 = scmp.eq.s32.totalorder %s18, 0
    %p176 = por %p174, %p175
    %p177 = scmp.le.s32.totalorder 1, %s12
    %p178 = scmp.lt.s32.totalorder %s12, 3
    %p179 = pnand %p177, %p178
    %p180 = pneg %p179
    // Predicated region
    $region9: #{tbasic_block_forward.1} parent=5 // pred_check
      _
    $region10: #{tbasic_block_forward.1} parent=5 // pred_check_branch
      %182 = sbr.rel (%p179) target = $region12
    $region11: #{tbasic_block_forward.1} parent=5 // pred_region
      %s183 = ssub.s32 %s12, 1
      // Predicated region
      $region13: #{tbasic_block_forward.1} parent=11 // pred_check
        %p184 = pneg %p59
      $region14: #{tbasic_block_forward.1} parent=11 // pred_check_branch
        %186 = sbr.rel (%p184) target = $region16
      $region15: #{tbasic_block_forward.1} parent=11 // pred_region
        _
      $region16: #{tbasic_block_forward.1} parent=11 // pred_fallthru
        _
      // Predicated region
      $region17: #{tbasic_block_forward.1} parent=11 // pred_check
        %p187 = pneg %p80
      $region18: #{tbasic_block_forward.1} parent=11 // pred_check_branch
        %189 = sbr.rel (%p187) target = $region20
      $region19: #{tbasic_block_forward.1} parent=11 // pred_region
        _
      $region20: #{tbasic_block_forward.1} parent=11 // pred_fallthru
        _
      // Predicated region
      $region21: #{tbasic_block_forward.1} parent=11 // pred_check
        %p190 = pneg %p101
      $region22: #{tbasic_block_forward.1} parent=11 // pred_check_branch
        %192 = sbr.rel (%p190) target = $region24
      $region23: #{tbasic_block_forward.1} parent=11 // pred_region
        _
      $region24: #{tbasic_block_forward.1} parent=11 // pred_fallthru
        _
      // Predicated region
      $region25: #{tbasic_block_forward.1} parent=11 // pred_check
        %p193 = pneg %p122
      $region26: #{tbasic_block_forward.1} parent=11 // pred_check_branch
        %195 = sbr.rel (%p193) target = $region28
      $region27: #{tbasic_block_forward.1} parent=11 // pred_region
        _
      $region28: #{tbasic_block_forward.1} parent=11 // pred_fallthru
        _
      // Predicated region
      $region29: #{tbasic_block_forward.1} parent=11 // pred_check
        %p196 = pneg %p143
      $region30: #{tbasic_block_forward.1} parent=11 // pred_check_branch
        %198 = sbr.rel (%p196) target = $region32
      $region31: #{tbasic_block_forward.1} parent=11 // pred_region
        _
      $region32: #{tbasic_block_forward.1} parent=11 // pred_fallthru
        _
    $region12: #{tbasic_block_forward.1} parent=5 // pred_fallthru
      _
    %p199 = scmp.lt.s32.totalorder %s12, 2
    // Predicated region
    $region33: #{tbasic_block_forward.1} parent=5 // pred_check
      %p200 = pneg %p199
    $region34: #{tbasic_block_forward.1} parent=5 // pred_check_branch
      %202 = sbr.rel (%p200) target = $region36
    $region35: #{tbasic_block_forward.1} parent=5 // pred_region
      // Predicated region
      $region37: #{tbasic_block_forward.1} parent=35 // pred_check
        %p203 = pneg %p32
      $region38: #{tbasic_block_forward.1} parent=35 // pred_check_branch
        %205 = sbr.rel (%p203) target = $region40
      $region39: #{tbasic_block_forward.1} parent=35 // pred_region
        %p206 = scmp.lt.s32.totalorder %s12, 1
        %s207 = scalar_select %p206, %s12, 1
        %s208 = smul.addr %s207, 3
        %s209 = smul.addr %s208, 8
        %s210 = scalar_lea.vmem %s0, %s209
      $region40: #{tbasic_block_forward.1} parent=35 // pred_fallthru
        _
    $region36: #{tbasic_block_forward.1} parent=5 // pred_fallthru
      _
    %p211 = scmp.le.s32.totalorder 1, %s12
    %p212 = scmp.lt.s32.totalorder %s12, 3
    %p213 = pnand %p211, %p212
    %p214 = pneg %p213
    // Predicated region
    $region41: #{tbasic_block_forward.1} parent=5 // pred_check
      _
    $region42: #{tbasic_block_forward.1} parent=5 // pred_check_branch
      %216 = sbr.rel (%p213) target = $region44
    $region43: #{tbasic_block_forward.1} parent=5 // pred_region
      %s217 = ssub.s32 %s12, 1
      %p218 = scmp.lt.s32.totalorder %s17, 1
      %s219 = scalar_select %p218, %s17, 1
      %s220 = smul.addr %s219, 3
      %s221 = smul.addr %s220, 8
      %s222 = scalar_lea.vmem %s0, %s221
      %p223 = pneg %p38
      %p224 = pneg %p35
      %p225 = pneg %p59
      %p226 = pneg %p56
      %p227 = pneg %p80
      %p228 = pneg %p77
      %p229 = pneg %p101
      %p230 = pneg %p98
      %p231 = pneg %p122
      %p232 = pneg %p119
      %p233 = pneg %p143
      %p234 = pneg %p140
      %p235 = pneg %p169
      %p236 = pneg %p166
      %p237 = scmp.lt.s32.totalorder %s17, 1
      %s238 = scalar_select %p237, %s17, 1
      %s239 = smul.addr %s238, 3
      %s240 = smul.addr %s239, 8
      %s241 = scalar_lea.vmem %s6, %s240
      %p242 = scmp.lt.s32.totalorder %s17, 1
      %s243 = scalar_select %p242, %s17, 1
      %s244 = smul.addr %s243, 3
      %s245 = smul.addr %s244, 8
      %s246 = scalar_lea.vmem %s0, %s245
      %p247 = scmp.lt.s32.totalorder %s17, 1
      %s248 = scalar_select %p247, %s17, 1
      %s249 = smul.addr %s248, 3
      %s250 = smul.addr %s249, 8
      %s251 = scalar_lea.vmem %s6, %s250
      %252 = vst [vmem:[#allocation2] sm:$0xff] 0.0
      %253 = vst [vmem:[#allocation2 + $0x8] sm:$0xff] 0.0
      %254 = vst [vmem:[#allocation2 + $0x10] sm:$0xff] 0.0
      %255 = vst [vmem:[#allocation2 + $0x18] sm:$0xff] 0.0
      %v256 = vld [vmem:[%s246] sm:$0xff]
      %v257 = vld [vmem:[%s246 + $0x8] sm:$0xff]
      %v258 = vld [vmem:[%s246 + $0x10] sm:$0xff]
      %262 = vrot.lane.b32.xlu0 %v256, 50
      %v263 = vpop.permute.xlu0 %262
      %264 = vrot.lane.b32.xlu0 %v257, 50
      %v265 = vpop.permute.xlu0 %264
      %266 = vrot.lane.b32.xlu0 %v258, 50
      %v267 = vpop.permute.xlu0 %266
      %vm268 = vcmask 408576
      %v269 = vsel %vm268, %v263, %v265
      %v270 = vsel %vm268, %v265, %v267
      %vm275 = vcmask 1047952
      %276 = vst.msk [vmem:[#allocation2] sm:$0xff] %vm275, %v263
      %277 = vst [vmem:[#allocation2 + $0x8] sm:$0xff] %v269
      %278 = vst [vmem:[#allocation2 + $0x10] sm:$0xff] %v270
      %279 = vst.msk [vmem:[#allocation2 + $0x18] sm:$0xff] %vm268, %v267
      %v280 = vld [vmem:[#allocation2] sm:$0xff]
      %v281 = vld [vmem:[#allocation2 + $0x8] sm:$0xff]
      %v282 = vld [vmem:[#allocation2 + $0x10] sm:$0xff]
      %v283 = vld [vmem:[#allocation2 + $0x18] sm:$0xff]
      %288 = vrot.lane.b32.xlu0 %v280, 103
      %v289 = vpop.permute.xlu0 %288
      %290 = vrot.lane.b32.xlu0 %v281, 103
      %v291 = vpop.permute.xlu0 %290
      %292 = vrot.lane.b32.xlu0 %v282, 103
      %v293 = vpop.permute.xlu0 %292
      %294 = vrot.lane.b32.xlu0 %v283, 103
      %v295 = vpop.permute.xlu0 %294
      %vm296 = vcmask 842752
      %v297 = vsel %vm296, %v289, %v291
      %v298 = vsel %vm296, %v291, %v293
      %v299 = vsel %vm296, %v293, %v295
      %303 = vst [vmem:[#allocation3] sm:$0xff] %v297
      %304 = vst [vmem:[#allocation3 + $0x8] sm:$0xff] %v298
      %305 = vst [vmem:[#allocation3 + $0x10] sm:$0xff] %v299
      %v306 = vld [vmem:[#allocation2] sm:$0xff]
      %v307 = vld [vmem:[#allocation2 + $0x8] sm:$0xff]
      %v308 = vld [vmem:[#allocation2 + $0x10] sm:$0xff]
      %309 = vst [vmem:[#allocation3 + $0x18] sm:$0xff] %v306
      %310 = vst [vmem:[#allocation3 + $0x20] sm:$0xff] %v307
      %311 = vst [vmem:[#allocation3 + $0x28] sm:$0xff] %v308
      %v312 = vld [vmem:[#allocation2] sm:$0xff]
      %v313 = vld [vmem:[#allocation2 + $0x8] sm:$0xff]
      %v314 = vld [vmem:[#allocation2 + $0x10] sm:$0xff]
      %v315 = vld [vmem:[#allocation2 + $0x18] sm:$0xff]
      %320 = vrot.lane.b32.xlu0 %v312, 102
      %v321 = vpop.permute.xlu0 %320
      %322 = vrot.lane.b32.xlu0 %v313, 102
      %v323 = vpop.permute.xlu0 %322
      %324 = vrot.lane.b32.xlu0 %v314, 102
      %v325 = vpop.permute.xlu0 %324
      %326 = vrot.lane.b32.xlu0 %v315, 102
      %v327 = vpop.permute.xlu0 %326
      %vm328 = vcmask 834560
      %v329 = vsel %vm328, %v321, %v323
      %v330 = vsel %vm328, %v323, %v325
      %v331 = vsel %vm328, %v325, %v327
      %335 = vst [vmem:[#allocation3 + $0x30] sm:$0xff] %v329
      %336 = vst [vmem:[#allocation3 + $0x38] sm:$0xff] %v330
      %337 = vst [vmem:[#allocation3 + $0x40] sm:$0xff] %v331
      %v338 = vld [vmem:[#allocation2] sm:$0xff]
      %v339 = vld [vmem:[#allocation2 + $0x8] sm:$0xff]
      %v340 = vld [vmem:[#allocation2 + $0x10] sm:$0xff]
      %v341 = vld [vmem:[#allocation2 + $0x18] sm:$0xff]
      %346 = vrot.lane.b32.xlu0 %v338, 126
      %v347 = vpop.permute.xlu0 %346
      %348 = vrot.lane.b32.xlu0 %v339, 126
      %v349 = vpop.permute.xlu0 %348
      %350 = vrot.lane.b32.xlu0 %v340, 126
      %v351 = vpop.permute.xlu0 %350
      %352 = vrot.lane.b32.xlu0 %v341, 126
      %v353 = vpop.permute.xlu0 %352
      %vm354 = vcmask 1031168
      %v355 = vsel %vm354, %v347, %v349
      %v356 = vsel %vm354, %v349, %v351
      %v357 = vsel %vm354, %v351, %v353
      %361 = vst [vmem:[#allocation3 + $0x48] sm:$0xff] %v355
      %362 = vst [vmem:[#allocation3 + $0x50] sm:$0xff] %v356
      %363 = vst [vmem:[#allocation3 + $0x58] sm:$0xff] %v357
      %v364 = vld [vmem:[#allocation2] sm:$0xff]
      %v365 = vld [vmem:[#allocation2 + $0x8] sm:$0xff]
      %v366 = vld [vmem:[#allocation2 + $0x10] sm:$0xff]
      %v367 = vld [vmem:[#allocation2 + $0x18] sm:$0xff]
      %372 = vrot.lane.b32.xlu0 %v364, 101
      %v373 = vpop.permute.xlu0 %372
      %374 = vrot.lane.b32.xlu0 %v365, 101
      %v375 = vpop.permute.xlu0 %374
      %376 = vrot.lane.b32.xlu0 %v366, 101
      %v377 = vpop.permute.xlu0 %376
      %378 = vrot.lane.b32.xlu0 %v367, 101
      %v379 = vpop.permute.xlu0 %378
      %vm380 = vcmask 826368
      %v381 = vsel %vm380, %v373, %v375
      %v382 = vsel %vm380, %v375, %v377
      %v383 = vsel %vm380, %v377, %v379
      %387 = vst [vmem:[#allocation3 + $0x60] sm:$0xff] %v381
      %388 = vst [vmem:[#allocation3 + $0x68] sm:$0xff] %v382
      %389 = vst [vmem:[#allocation3 + $0x70] sm:$0xff] %v383
      %v390 = vld [vmem:[#allocation2] sm:$0xff]
      %v391 = vld [vmem:[#allocation2 + $0x8] sm:$0xff]
      %v392 = vld [vmem:[#allocation2 + $0x10] sm:$0xff]
      %v393 = vld [vmem:[#allocation2 + $0x18] sm:$0xff]
      %398 = vrot.lane.b32.xlu0 %v390, 124
      %v399 = vpop.permute.xlu0 %398
      %400 = vrot.lane.b32.xlu0 %v391, 124
      %v401 = vpop.permute.xlu0 %400
      %402 = vrot.lane.b32.xlu0 %v392, 124
      %v403 = vpop.permute.xlu0 %402
      %404 = vrot.lane.b32.xlu0 %v393, 124
      %v405 = vpop.permute.xlu0 %404
      %vm406 = vcmask 1014784
      %v407 = vsel %vm406, %v399, %v401
      %v408 = vsel %vm406, %v401, %v403
      %v409 = vsel %vm406, %v403, %v405
      %413 = vst [vmem:[#allocation3 + $0x78] sm:$0xff] %v407
      %414 = vst [vmem:[#allocation3 + $0x80] sm:$0xff] %v408
      %415 = vst [vmem:[#allocation3 + $0x88] sm:$0xff] %v409
      %v416 = vld [vmem:[#allocation2] sm:$0xff]
      %v417 = vld [vmem:[#allocation2 + $0x8] sm:$0xff]
      %v418 = vld [vmem:[#allocation2 + $0x10] sm:$0xff]
      %v419 = vld [vmem:[#allocation2 + $0x18] sm:$0xff]
      %424 = vrot.lane.b32.xlu0 %v416, 79
      %v425 = vpop.permute.xlu0 %424
      %426 = vrot.lane.b32.xlu0 %v417, 79
      %v427 = vpop.permute.xlu0 %426
      %428 = vrot.lane.b32.xlu0 %v418, 79
      %v429 = vpop.permute.xlu0 %428
      %430 = vrot.lane.b32.xlu0 %v419, 79
      %v431 = vpop.permute.xlu0 %430
      %vm432 = vcmask 646144
      %v433 = vsel %vm432, %v425, %v427
      %v434 = vsel %vm432, %v427, %v429
      %v435 = vsel %vm432, %v429, %v431
      %439 = vst [vmem:[#allocation3 + $0x90] sm:$0xff] %v433
      %440 = vst [vmem:[#allocation3 + $0x98] sm:$0xff] %v434
      %441 = vst [vmem:[#allocation3 + $0xa0] sm:$0xff] %v435
      %v442 = vld [vmem:[#allocation2] sm:$0xff]
      %v443 = vld [vmem:[#allocation2 + $0x8] sm:$0xff]
      %v444 = vld [vmem:[#allocation2 + $0x10] sm:$0xff]
      %v445 = vld [vmem:[#allocation2 + $0x18] sm:$0xff]
      %450 = vrot.lane.b32.xlu0 %v442, 80
      %v451 = vpop.permute.xlu0 %450
      %452 = vrot.lane.b32.xlu0 %v443, 80
      %v453 = vpop.permute.xlu0 %452
      %454 = vrot.lane.b32.xlu0 %v444, 80
      %v455 = vpop.permute.xlu0 %454
      %456 = vrot.lane.b32.xlu0 %v445, 80
      %v457 = vpop.permute.xlu0 %456
      %vm458 = vcmask 654336
      %v459 = vsel %vm458, %v451, %v453
      %v460 = vsel %vm458, %v453, %v455
      %v461 = vsel %vm458, %v455, %v457
      %465 = vst [vmem:[#allocation3 + $0xa8] sm:$0xff] %v459
      %466 = vst [vmem:[#allocation3 + $0xb0] sm:$0xff] %v460
      %467 = vst [vmem:[#allocation3 + $0xb8] sm:$0xff] %v461
      %v468 = vld [vmem:[#allocation2] sm:$0xff]
      %v469 = vld [vmem:[#allocation2 + $0x8] sm:$0xff]
      %v470 = vld [vmem:[#allocation2 + $0x10] sm:$0xff]
      %v471 = vld [vmem:[#allocation2 + $0x18] sm:$0xff]
      %476 = vrot.lane.b32.xlu0 %v468, 78
      %v477 = vpop.permute.xlu0 %476
      %478 = vrot.lane.b32.xlu0 %v469, 78
      %v479 = vpop.permute.xlu0 %478
      %480 = vrot.lane.b32.xlu0 %v470, 78
      %v481 = vpop.permute.xlu0 %480
      %482 = vrot.lane.b32.xlu0 %v471, 78
      %v483 = vpop.permute.xlu0 %482
      %vm484 = vcmask 637952
      %v485 = vsel %vm484, %v477, %v479
      %v486 = vsel %vm484, %v479, %v481
      %v487 = vsel %vm484, %v481, %v483
      %491 = vst [vmem:[#allocation3 + $0xc0] sm:$0xff] %v485
      %492 = vst [vmem:[#allocation3 + $0xc8] sm:$0xff] %v486
      %493 = vst [vmem:[#allocation3 + $0xd0] sm:$0xff] %v487
      %v494 = vld [vmem:[#allocation2] sm:$0xff]
      %v495 = vld [vmem:[#allocation2 + $0x8] sm:$0xff]
      %v496 = vld [vmem:[#allocation2 + $0x10] sm:$0xff]
      %v497 = vld [vmem:[#allocation2 + $0x18] sm:$0xff]
      %502 = vrot.lane.b32.xlu0 %v494, 78
      %v503 = vpop.permute.xlu0 %502
      %504 = vrot.lane.b32.xlu0 %v495, 78
      %v505 = vpop.permute.xlu0 %504
      %506 = vrot.lane.b32.xlu0 %v496, 78
      %v507 = vpop.permute.xlu0 %506
      %508 = vrot.lane.b32.xlu0 %v497, 78
      %v509 = vpop.permute.xlu0 %508
      %v510 = vsel %vm484, %v503, %v505
      %v511 = vsel %vm484, %v505, %v507
      %v512 = vsel %vm484, %v507, %v509
      %516 = vst [vmem:[#allocation3 + $0xd8] sm:$0xff] %v510
      %517 = vst [vmem:[#allocation3 + $0xe0] sm:$0xff] %v511
      %518 = vst [vmem:[#allocation3 + $0xe8] sm:$0xff] %v512
      %v519 = vld [vmem:[#allocation2] sm:$0xff]
      %v520 = vld [vmem:[#allocation2 + $0x8] sm:$0xff]
      %v521 = vld [vmem:[#allocation2 + $0x10] sm:$0xff]
      %v522 = vld [vmem:[#allocation2 + $0x18] sm:$0xff]
      %527 = vrot.lane.b32.xlu0 %v519, 77
      %v528 = vpop.permute.xlu0 %527
      %529 = vrot.lane.b32.xlu0 %v520, 77
      %v530 = vpop.permute.xlu0 %529
      %531 = vrot.lane.b32.xlu0 %v521, 77
      %v532 = vpop.permute.xlu0 %531
      %533 = vrot.lane.b32.xlu0 %v522, 77
      %v534 = vpop.permute.xlu0 %533
      %vm535 = vcmask 629760
      %v536 = vsel %vm535, %v528, %v530
      %v537 = vsel %vm535, %v530, %v532
      %v538 = vsel %vm535, %v532, %v534
      %542 = vst [vmem:[#allocation3 + $0xf0] sm:$0xff] %v536
      %543 = vst [vmem:[#allocation3 + $0xf8] sm:$0xff] %v537
      %544 = vst [vmem:[#allocation3 + $0x100] sm:$0xff] %v538
      %v545 = vld [vmem:[#allocation2] sm:$0xff]
      %v546 = vld [vmem:[#allocation2 + $0x8] sm:$0xff]
      %v547 = vld [vmem:[#allocation2 + $0x10] sm:$0xff]
      %v548 = vld [vmem:[#allocation2 + $0x18] sm:$0xff]
      %553 = vrot.lane.b32.xlu0 %v545, 76
      %v554 = vpop.permute.xlu0 %553
      %555 = vrot.lane.b32.xlu0 %v546, 76
      %v556 = vpop.permute.xlu0 %555
      %557 = vrot.lane.b32.xlu0 %v547, 76
      %v558 = vpop.permute.xlu0 %557
      %559 = vrot.lane.b32.xlu0 %v548, 76
      %v560 = vpop.permute.xlu0 %559
      %vm561 = vcmask 621568
      %v562 = vsel %vm561, %v554, %v556
      %v563 = vsel %vm561, %v556, %v558
      %v564 = vsel %vm561, %v558, %v560
      %568 = vst [vmem:[#allocation3 + $0x108] sm:$0xff] %v562
      %569 = vst [vmem:[#allocation3 + $0x110] sm:$0xff] %v563
      %570 = vst [vmem:[#allocation3 + $0x118] sm:$0xff] %v564
      %v571 = vld [vmem:[#allocation2] sm:$0xff]
      %v572 = vld [vmem:[#allocation2 + $0x8] sm:$0xff]
      %v573 = vld [vmem:[#allocation2 + $0x10] sm:$0xff]
      %v574 = vld [vmem:[#allocation2 + $0x18] sm:$0xff]
      %579 = vrot.lane.b32.xlu0 %v571, 55
      %v580 = vpop.permute.xlu0 %579
      %581 = vrot.lane.b32.xlu0 %v572, 55
      %v582 = vpop.permute.xlu0 %581
      %583 = vrot.lane.b32.xlu0 %v573, 55
      %v584 = vpop.permute.xlu0 %583
      %585 = vrot.lane.b32.xlu0 %v574, 55
      %v586 = vpop.permute.xlu0 %585
      %vm587 = vcmask 449536
      %v588 = vsel %vm587, %v580, %v582
      %v589 = vsel %vm587, %v582, %v584
      %v590 = vsel %vm587, %v584, %v586
      %594 = vst [vmem:[#allocation3 + $0x120] sm:$0xff] %v588
      %595 = vst [vmem:[#allocation3 + $0x128] sm:$0xff] %v589
      %596 = vst [vmem:[#allocation3 + $0x130] sm:$0xff] %v590
      %v597 = vld [vmem:[#allocation2] sm:$0xff]
      %v598 = vld [vmem:[#allocation2 + $0x8] sm:$0xff]
      %v599 = vld [vmem:[#allocation2 + $0x10] sm:$0xff]
      %v600 = vld [vmem:[#allocation2 + $0x18] sm:$0xff]
      %605 = vrot.lane.b32.xlu0 %v597, 32
      %v606 = vpop.permute.xlu0 %605
      %607 = vrot.lane.b32.xlu0 %v598, 32
      %v608 = vpop.permute.xlu0 %607
      %609 = vrot.lane.b32.xlu0 %v599, 32
      %v610 = vpop.permute.xlu0 %609
      %611 = vrot.lane.b32.xlu0 %v600, 32
      %v612 = vpop.permute.xlu0 %611
      %vm613 = vcmask 261120
      %v614 = vsel %vm613, %v606, %v608
      %v615 = vsel %vm613, %v608, %v610
      %v616 = vsel %vm613, %v610, %v612
      %620 = vst [vmem:[#allocation3 + $0x138] sm:$0xff] %v614
      %621 = vst [vmem:[#allocation3 + $0x140] sm:$0xff] %v615
      %622 = vst [vmem:[#allocation3 + $0x148] sm:$0xff] %v616
      %v623 = vld [vmem:[#allocation2] sm:$0xff]
      %v624 = vld [vmem:[#allocation2 + $0x8] sm:$0xff]
      %v625 = vld [vmem:[#allocation2 + $0x10] sm:$0xff]
      %v626 = vld [vmem:[#allocation2 + $0x18] sm:$0xff]
      %631 = vrot.lane.b32.xlu0 %v623, 54
      %v632 = vpop.permute.xlu0 %631
      %633 = vrot.lane.b32.xlu0 %v624, 54
      %v634 = vpop.permute.xlu0 %633
      %635 = vrot.lane.b32.xlu0 %v625, 54
      %v636 = vpop.permute.xlu0 %635
      %637 = vrot.lane.b32.xlu0 %v626, 54
      %v638 = vpop.permute.xlu0 %637
      %vm639 = vcmask 441344
      %v640 = vsel %vm639, %v632, %v634
      %v641 = vsel %vm639, %v634, %v636
      %v642 = vsel %vm639, %v636, %v638
      %646 = vst [vmem:[#allocation3 + $0x150] sm:$0xff] %v640
      %647 = vst [vmem:[#allocation3 + $0x158] sm:$0xff] %v641
      %648 = vst [vmem:[#allocation3 + $0x160] sm:$0xff] %v642
      %v649 = vld [vmem:[#allocation2] sm:$0xff]
      %v650 = vld [vmem:[#allocation2 + $0x8] sm:$0xff]
      %v651 = vld [vmem:[#allocation2 + $0x10] sm:$0xff]
      %v652 = vld [vmem:[#allocation2 + $0x18] sm:$0xff]
      %657 = vrot.lane.b32.xlu0 %v649, 30
      %v658 = vpop.permute.xlu0 %657
      %659 = vrot.lane.b32.xlu0 %v650, 30
      %v660 = vpop.permute.xlu0 %659
      %661 = vrot.lane.b32.xlu0 %v651, 30
      %v662 = vpop.permute.xlu0 %661
      %663 = vrot.lane.b32.xlu0 %v652, 30
      %v664 = vpop.permute.xlu0 %663
      %vm665 = vcmask 244736
      %v666 = vsel %vm665, %v658, %v660
      %v667 = vsel %vm665, %v660, %v662
      %v668 = vsel %vm665, %v662, %v664
      %672 = vst [vmem:[#allocation3 + $0x168] sm:$0xff] %v666
      %673 = vst [vmem:[#allocation3 + $0x170] sm:$0xff] %v667
      %674 = vst [vmem:[#allocation3 + $0x178] sm:$0xff] %v668
      %v675 = vld [vmem:[#allocation2] sm:$0xff]
      %v676 = vld [vmem:[#allocation2 + $0x8] sm:$0xff]
      %v677 = vld [vmem:[#allocation2 + $0x10] sm:$0xff]
      %v678 = vld [vmem:[#allocation2 + $0x18] sm:$0xff]
      %683 = vrot.lane.b32.xlu0 %v675, 53
      %v684 = vpop.permute.xlu0 %683
      %685 = vrot.lane.b32.xlu0 %v676, 53
      %v686 = vpop.permute.xlu0 %685
      %687 = vrot.lane.b32.xlu0 %v677, 53
      %v688 = vpop.permute.xlu0 %687
      %689 = vrot.lane.b32.xlu0 %v678, 53
      %v690 = vpop.permute.xlu0 %689
      %vm691 = vcmask 433152
      %v692 = vsel %vm691, %v684, %v686
      %v693 = vsel %vm691, %v686, %v688
      %v694 = vsel %vm691, %v688, %v690
      %698 = vst [vmem:[#allocation3 + $0x180] sm:$0xff] %v692
      %699 = vst [vmem:[#allocation3 + $0x188] sm:$0xff] %v693
      %700 = vst [vmem:[#allocation3 + $0x190] sm:$0xff] %v694
      %v701 = vld [vmem:[#allocation2] sm:$0xff]
      %v702 = vld [vmem:[#allocation2 + $0x8] sm:$0xff]
      %v703 = vld [vmem:[#allocation2 + $0x10] sm:$0xff]
      %v704 = vld [vmem:[#allocation2 + $0x18] sm:$0xff]
      %709 = vrot.lane.b32.xlu0 %v701, 28
      %v710 = vpop.permute.xlu0 %709
      %711 = vrot.lane.b32.xlu0 %v702, 28
      %v712 = vpop.permute.xlu0 %711
      %713 = vrot.lane.b32.xlu0 %v703, 28
      %v714 = vpop.permute.xlu0 %713
      %715 = vrot.lane.b32.xlu0 %v704, 28
      %v716 = vpop.permute.xlu0 %715
      %vm717 = vcmask 228352
      %v718 = vsel %vm717, %v710, %v712
      %v719 = vsel %vm717, %v712, %v714
      %v720 = vsel %vm717, %v714, %v716
      %724 = vst [vmem:[#allocation3 + $0x198] sm:$0xff] %v718
      %725 = vst [vmem:[#allocation3 + $0x1a0] sm:$0xff] %v719
      %726 = vst [vmem:[#allocation3 + $0x1a8] sm:$0xff] %v720
      %v727 = vld [vmem:[%s1] sm:$0xff]
      %v728 = vld [vmem:[%s1 + $0x8] sm:$0xff]
      %v729 = vld [vmem:[#allocation3] sm:$0xff]
      %v730 = vld [vmem:[#allocation3 + $0x8] sm:$0xff]
      %v731 = vld [vmem:[#allocation3 + $0x10] sm:$0xff]
      %v732 = vld [vmem:[#allocation3 + $0x18] sm:$0xff]
      %v733 = vld [vmem:[#allocation3 + $0x20] sm:$0xff]
      %v734 = vld [vmem:[#allocation3 + $0x28] sm:$0xff]
      %v735 = vld [vmem:[#allocation3 + $0x30] sm:$0xff]
      %v736 = vld [vmem:[#allocation3 + $0x38] sm:$0xff]
      %v737 = vld [vmem:[#allocation3 + $0x40] sm:$0xff]
      %v738 = vld [vmem:[#allocation3 + $0x48] sm:$0xff]
      %v739 = vld [vmem:[#allocation3 + $0x50] sm:$0xff]
      %v740 = vld [vmem:[#allocation3 + $0x58] sm:$0xff]
      %v741 = vld [vmem:[#allocation3 + $0x60] sm:$0xff]
      %v742 = vld [vmem:[#allocation3 + $0x68] sm:$0xff]
      %v743 = vld [vmem:[#allocation3 + $0x70] sm:$0xff]
      %v744 = vld [vmem:[#allocation3 + $0x78] sm:$0xff]
      %v745 = vld [vmem:[#allocation3 + $0x80] sm:$0xff]
      %v746 = vld [vmem:[#allocation3 + $0x88] sm:$0xff]
      %v747 = vld [vmem:[#allocation3 + $0x90] sm:$0xff]
      %v748 = vld [vmem:[#allocation3 + $0x98] sm:$0xff]
      %v749 = vld [vmem:[#allocation3 + $0xa0] sm:$0xff]
      %v750 = vld [vmem:[#allocation3 + $0xa8] sm:$0xff]
      %v751 = vld [vmem:[#allocation3 + $0xb0] sm:$0xff]
      %v752 = vld [vmem:[#allocation3 + $0xb8] sm:$0xff]
      %v753 = vld [vmem:[#allocation3 + $0xc0] sm:$0xff]
      %v754 = vld [vmem:[#allocation3 + $0xc8] sm:$0xff]
      %v755 = vld [vmem:[#allocation3 + $0xd0] sm:$0xff]
      %v756 = vld [vmem:[#allocation3 + $0xd8] sm:$0xff]
      %v757 = vld [vmem:[#allocation3 + $0xe0] sm:$0xff]
      %v758 = vld [vmem:[#allocation3 + $0xe8] sm:$0xff]
      %v759 = vld [vmem:[#allocation3 + $0xf0] sm:$0xff]
      %v760 = vld [vmem:[#allocation3 + $0xf8] sm:$0xff]
      %v761 = vld [vmem:[#allocation3 + $0x100] sm:$0xff]
      %v762 = vld [vmem:[#allocation3 + $0x108] sm:$0xff]
      %v763 = vld [vmem:[#allocation3 + $0x110] sm:$0xff]
      %v764 = vld [vmem:[#allocation3 + $0x118] sm:$0xff]
      %v765 = vld [vmem:[#allocation3 + $0x120] sm:$0xff]
      %v766 = vld [vmem:[#allocation3 + $0x128] sm:$0xff]
      %v767 = vld [vmem:[#allocation3 + $0x130] sm:$0xff]
      %v768 = vld [vmem:[#allocation3 + $0x138] sm:$0xff]
      %v769 = vld [vmem:[#allocation3 + $0x140] sm:$0xff]
      %v770 = vld [vmem:[#allocation3 + $0x148] sm:$0xff]
      %v771 = vld [vmem:[#allocation3 + $0x150] sm:$0xff]
      %v772 = vld [vmem:[#allocation3 + $0x158] sm:$0xff]
      %v773 = vld [vmem:[#allocation3 + $0x160] sm:$0xff]
      %v774 = vld [vmem:[#allocation3 + $0x168] sm:$0xff]
      %v775 = vld [vmem:[#allocation3 + $0x170] sm:$0xff]
      %v776 = vld [vmem:[#allocation3 + $0x178] sm:$0xff]
      %v777 = vld [vmem:[#allocation3 + $0x180] sm:$0xff]
      %v778 = vld [vmem:[#allocation3 + $0x188] sm:$0xff]
      %v779 = vld [vmem:[#allocation3 + $0x190] sm:$0xff]
      %v780 = vld [vmem:[#allocation3 + $0x198] sm:$0xff]
      %v781 = vld [vmem:[#allocation3 + $0x1a0] sm:$0xff]
      %v782 = vld [vmem:[#allocation3 + $0x1a8] sm:$0xff]
      %v783 = vld [vmem:[%s2] sm:$0xff]
      %785 = vset.pattern.permute.xlu0 0
      %786 = vperm.xlu0 %785, %v783
      %v787 = vpop.permute.xlu0 %786
      %vm789 = vcmask 130048
      %v791 = vsel %vm789, %v728, 0
      %793 = vmatprep.subr.mxu0 %v775
      %794 = vmatpush1.msra.mxu0 %v774
      %795 = vmatprep.subr.mxu0 %v772
      %796 = vmatpush1.msra.mxu0 %v771
      %797 = vmatprep.subr.mxu0 %v769
      %798 = vmatpush1.msra.mxu0 %v768
      %799 = vmatprep.subr.mxu0 %v766
      %800 = vmatpush1.msra.mxu0 %v765
      %801 = vmatprep.subr.mxu0 %v763
      %802 = vmatpush1.msra.mxu0 %v762
      %803 = vmatprep.subr.mxu0 %v760
      %804 = vmatpush1.msra.mxu0 %v759
      %805 = vmatprep.subr.mxu0 %v757
      %806 = vmatpush1.msra.mxu0 %v756
      %807 = vmatprep.subr.mxu0 %v754
      %808 = vmatpush1.msra.mxu0 %v753
      %809 = vmatprep.subr.mxu0 %v751
      %810 = vmatpush1.msra.mxu0 %v750
      %811 = vmatprep.subr.mxu0 %v748
      %812 = vmatpush1.msra.mxu0 %v747
      %813 = vmatprep.subr.mxu0 %v745
      %814 = vmatpush1.msra.mxu0 %v744
      %815 = vmatprep.subr.mxu0 %v742
      %816 = vmatpush1.msra.mxu0 %v741
      %817 = vmatprep.subr.mxu0 %v739
      %818 = vmatpush1.msra.mxu0 %v738
      %819 = vmatprep.subr.mxu0 %v736
      %820 = vmatpush1.msra.mxu0 %v735
      %821 = vmatprep.subr.mxu0 %v733
      %822 = vmatpush1.msra.mxu0 %v732
      %823 = vmatprep.subr.mxu0 %v730
      %824 = vmatpush1.msra.mxu0 %v729
      %825 = vmatprep.subr.mxu0 0.0
      %826 = vmatpush2.msra.mxu0 0.0
      %827 = vmatprep.subr.mxu0 0.0
      %828 = vmatpush2.msra.mxu0 0.0
      %829 = vmatprep.subr.mxu0 0.0
      %830 = vmatpush2.msra.mxu0 0.0
      %831 = vmatprep.subr.mxu0 0.0
      %832 = vmatpush2.msra.mxu0 0.0
      %833 = vmatprep.subr.mxu0 0.0
      %834 = vmatpush2.msra.mxu0 0.0
      %835 = vmatprep.subr.mxu0 0.0
      %836 = vmatpush2.msra.mxu0 0.0
      %837 = vmatprep.subr.mxu0 0.0
      %838 = vmatpush2.msra.mxu0 0.0
      %839 = vmatprep.subr.mxu0 0.0
      %840 = vmatpush2.msra.mxu0 0.0
      %841 = vmatprep.subr.mxu0 0.0
      %842 = vmatpush2.msra.mxu0 0.0
      %843 = vmatprep.subr.mxu0 0.0
      %844 = vmatpush2.msra.mxu0 0.0
      %845 = vmatprep.subr.mxu0 0.0
      %846 = vmatpush2.msra.mxu0 0.0
      %847 = vmatprep.subr.mxu0 0.0
      %848 = vmatpush2.msra.mxu0 0.0
      %849 = vmatprep.subr.mxu0 0.0
      %850 = vmatpush2.msra.mxu0 0.0
      %851 = vmatprep.subr.mxu0 0.0
      %852 = vmatpush2.msra.mxu0 0.0
      %853 = vmatprep.subr.mxu0 %v781
      %854 = vmatpush2.msra.mxu0 %v780
      %855 = vmatprep.subr.mxu0 %v778
      %856 = vmatpush2.msra.mxu0 %v777
      %857 = vmatprep.mubr.f32.mxu0 %v791
      %858 = vmatmul.mubr.f32.gmra.mxu0 %v727
      %v859 = vpop.f32.mrf.mxu0
      %v860 = vadd.f32 %v787, %v859
      %v861 = vpop.f32.mrf.mxu0
      %v862 = vadd.f32 %v787, %v861
      %863 = vdwg.mxu0
      %864 = vmatprep.subr.mxu0 0.0
      %865 = vmatpush1.msra.mxu0 %v776
      %866 = vmatprep.subr.mxu0 0.0
      %867 = vmatpush1.msra.mxu0 %v773
      %868 = vmatprep.subr.mxu0 0.0
      %869 = vmatpush1.msra.mxu0 %v770
      %870 = vmatprep.subr.mxu0 0.0
      %871 = vmatpush1.msra.mxu0 %v767
      %872 = vmatprep.subr.mxu0 0.0
      %873 = vmatpush1.msra.mxu0 %v764
      %874 = vmatprep.subr.mxu0 0.0
      %875 = vmatpush1.msra.mxu0 %v761
      %876 = vmatprep.subr.mxu0 0.0
      %877 = vmatpush1.msra.mxu0 %v758
      %878 = vmatprep.subr.mxu0 0.0
      %879 = vmatpush1.msra.mxu0 %v755
      %880 = vmatprep.subr.mxu0 0.0
      %881 = vmatpush1.msra.mxu0 %v752
      %882 = vmatprep.subr.mxu0 0.0
      %883 = vmatpush1.msra.mxu0 %v749
      %884 = vmatprep.subr.mxu0 0.0
      %885 = vmatpush1.msra.mxu0 %v746
      %886 = vmatprep.subr.mxu0 0.0
      %887 = vmatpush1.msra.mxu0 %v743
      %888 = vmatprep.subr.mxu0 0.0
      %889 = vmatpush1.msra.mxu0 %v740
      %890 = vmatprep.subr.mxu0 0.0
      %891 = vmatpush1.msra.mxu0 %v737
      %892 = vmatprep.subr.mxu0 0.0
      %893 = vmatpush1.msra.mxu0 %v734
      %894 = vmatprep.subr.mxu0 0.0
      %895 = vmatpush1.msra.mxu0 %v731
      %896 = vmatprep.subr.mxu0 0.0
      %897 = vmatpush2.msra.mxu0 0.0
      %898 = vmatprep.subr.mxu0 0.0
      %899 = vmatpush2.msra.mxu0 0.0
      %900 = vmatprep.subr.mxu0 0.0
      %901 = vmatpush2.msra.mxu0 0.0
      %902 = vmatprep.subr.mxu0 0.0
      %903 = vmatpush2.msra.mxu0 0.0
      %904 = vmatprep.subr.mxu0 0.0
      %905 = vmatpush2.msra.mxu0 0.0
      %906 = vmatprep.subr.mxu0 0.0
      %907 = vmatpush2.msra.mxu0 0.0
      %908 = vmatprep.subr.mxu0 0.0
      %909 = vmatpush2.msra.mxu0 0.0
      %910 = vmatprep.subr.mxu0 0.0
      %911 = vmatpush2.msra.mxu0 0.0
      %912 = vmatprep.subr.mxu0 0.0
      %913 = vmatpush2.msra.mxu0 0.0
      %914 = vmatprep.subr.mxu0 0.0
      %915 = vmatpush2.msra.mxu0 0.0
      %916 = vmatprep.subr.mxu0 0.0
      %917 = vmatpush2.msra.mxu0 0.0
      %918 = vmatprep.subr.mxu0 0.0
      %919 = vmatpush2.msra.mxu0 0.0
      %920 = vmatprep.subr.mxu0 0.0
      %921 = vmatpush2.msra.mxu0 0.0
      %922 = vmatprep.subr.mxu0 0.0
      %923 = vmatpush2.msra.mxu0 0.0
      %924 = vmatprep.subr.mxu0 0.0
      %925 = vmatpush2.msra.mxu0 %v782
      %926 = vmatprep.subr.mxu0 0.0
      %927 = vmatpush2.msra.mxu0 %v779
      %928 = vmatprep.mubr.f32.mxu0 %v791
      %929 = vmatmul.mubr.f32.gmra.mxu0 %v727
      %v930 = vpop.f32.mrf.mxu0
      %v931 = vadd.f32 %v787, %v930
      %v932 = vpop.f32.mrf.mxu0
      %933 = vdwg.mxu0
      %v934 = vmul.f32 %v860, 0.1
      %v935 = vmul.f32 %v862, 0.1
      %v936 = vmul.f32 %v931, 0.1
      %v937 = vmax.f32 %v860, %v934
      %v938 = vmax.f32 %v862, %v935
      %v939 = vmax.f32 %v931, %v936
      %v940 = vld [vmem:[%s5] sm:$0x7]
      %v942 = vlaneseq
      %v943 = vshrl.u32 %v942, 7
      %v944 = vsub.s32 0, %v943
      %v945 = vrot.slane %v940, %v944
      %v946 = vlaneseq
      %v947 = vshrl.u32 %v946, 7
      %v948 = vsub.s32 1, %v947
      %v949 = vrot.slane %v940, %v948
      %v950 = vlaneseq
      %v951 = vshrl.u32 %v950, 7
      %v952 = vsub.s32 2, %v951
      %v953 = vrot.slane %v940, %v952
      %v957 = vmul.f32 %v937, %v945
      %v958 = vmul.f32 %v938, %v949
      %v959 = vmul.f32 %v939, %v953
      %963 = vrot.lane.b32.xlu0 %v957, 50
      %v964 = vpop.permute.xlu0 %963
      %965 = vrot.lane.b32.xlu0 %v958, 50
      %v966 = vpop.permute.xlu0 %965
      %967 = vrot.lane.b32.xlu0 %v959, 50
      %v968 = vpop.permute.xlu0 %967
      %v969 = vsel %vm268, %v964, %v966
      %v970 = vsel %vm268, %v966, %v968
      %975 = vst.msk [vmem:[#allocation2] sm:$0xff] %vm275, %v964
      %976 = vst [vmem:[#allocation2 + $0x8] sm:$0xff] %v969
      %977 = vst [vmem:[#allocation2 + $0x10] sm:$0xff] %v970
      %978 = vst.msk [vmem:[#allocation2 + $0x18] sm:$0xff] %vm268, %v968
      %v979 = vld [vmem:[#allocation2] sm:$0xff]
      %v980 = vld [vmem:[#allocation2 + $0x8] sm:$0xff]
      %v981 = vld [vmem:[#allocation2 + $0x10] sm:$0xff]
      %v982 = vld [vmem:[#allocation2 + $0x18] sm:$0xff]
      %987 = vrot.lane.b32.xlu0 %v979, 103
      %v988 = vpop.permute.xlu0 %987
      %989 = vrot.lane.b32.xlu0 %v980, 103
      %v990 = vpop.permute.xlu0 %989
      %991 = vrot.lane.b32.xlu0 %v981, 103
      %v992 = vpop.permute.xlu0 %991
      %993 = vrot.lane.b32.xlu0 %v982, 103
      %v994 = vpop.permute.xlu0 %993
      %v995 = vsel %vm296, %v988, %v990
      %v996 = vsel %vm296, %v990, %v992
      %v997 = vsel %vm296, %v992, %v994
      %1001 = vst [vmem:[#allocation3] sm:$0xff] %v995
      %1002 = vst [vmem:[#allocation3 + $0x8] sm:$0xff] %v996
      %1003 = vst [vmem:[#allocation3 + $0x10] sm:$0xff] %v997
      %v1004 = vld [vmem:[#allocation2] sm:$0xff]
      %v1005 = vld [vmem:[#allocation2 + $0x8] sm:$0xff]
      %v1006 = vld [vmem:[#allocation2 + $0x10] sm:$0xff]
      %1007 = vst [vmem:[#allocation3 + $0x18] sm:$0xff] %v1004
      %1008 = vst [vmem:[#allocation3 + $0x20] sm:$0xff] %v1005
      %1009 = vst [vmem:[#allocation3 + $0x28] sm:$0xff] %v1006
      %v1010 = vld [vmem:[#allocation2] sm:$0xff]
      %v1011 = vld [vmem:[#allocation2 + $0x8] sm:$0xff]
      %v1012 = vld [vmem:[#allocation2 + $0x10] sm:$0xff]
      %v1013 = vld [vmem:[#allocation2 + $0x18] sm:$0xff]
      %1018 = vrot.lane.b32.xlu0 %v1010, 102
      %v1019 = vpop.permute.xlu0 %1018
      %1020 = vrot.lane.b32.xlu0 %v1011, 102
      %v1021 = vpop.permute.xlu0 %1020
      %1022 = vrot.lane.b32.xlu0 %v1012, 102
      %v1023 = vpop.permute.xlu0 %1022
      %1024 = vrot.lane.b32.xlu0 %v1013, 102
      %v1025 = vpop.permute.xlu0 %1024
      %v1026 = vsel %vm328, %v1019, %v1021
      %v1027 = vsel %vm328, %v1021, %v1023
      %v1028 = vsel %vm328, %v1023, %v1025
      %1032 = vst [vmem:[#allocation3 + $0x30] sm:$0xff] %v1026
      %1033 = vst [vmem:[#allocation3 + $0x38] sm:$0xff] %v1027
      %1034 = vst [vmem:[#allocation3 + $0x40] sm:$0xff] %v1028
      %v1035 = vld [vmem:[#allocation2] sm:$0xff]
      %v1036 = vld [vmem:[#allocation2 + $0x8] sm:$0xff]
      %v1037 = vld [vmem:[#allocation2 + $0x10] sm:$0xff]
      %v1038 = vld [vmem:[#allocation2 + $0x18] sm:$0xff]
      %1043 = vrot.lane.b32.xlu0 %v1035, 126
      %v1044 = vpop.permute.xlu0 %1043
      %1045 = vrot.lane.b32.xlu0 %v1036, 126
      %v1046 = vpop.permute.xlu0 %1045
      %1047 = vrot.lane.b32.xlu0 %v1037, 126
      %v1048 = vpop.permute.xlu0 %1047
      %1049 = vrot.lane.b32.xlu0 %v1038, 126
      %v1050 = vpop.permute.xlu0 %1049
      %v1051 = vsel %vm354, %v1044, %v1046
      %v1052 = vsel %vm354, %v1046, %v1048
      %v1053 = vsel %vm354, %v1048, %v1050
      %1057 = vst [vmem:[#allocation3 + $0x48] sm:$0xff] %v1051
      %1058 = vst [vmem:[#allocation3 + $0x50] sm:$0xff] %v1052
      %1059 = vst [vmem:[#allocation3 + $0x58] sm:$0xff] %v1053
      %v1060 = vld [vmem:[#allocation2] sm:$0xff]
      %v1061 = vld [vmem:[#allocation2 + $0x8] sm:$0xff]
      %v1062 = vld [vmem:[#allocation2 + $0x10] sm:$0xff]
      %v1063 = vld [vmem:[#allocation2 + $0x18] sm:$0xff]
      %1068 = vrot.lane.b32.xlu0 %v1060, 101
      %v1069 = vpop.permute.xlu0 %1068
      %1070 = vrot.lane.b32.xlu0 %v1061, 101
      %v1071 = vpop.permute.xlu0 %1070
      %1072 = vrot.lane.b32.xlu0 %v1062, 101
      %v1073 = vpop.permute.xlu0 %1072
      %1074 = vrot.lane.b32.xlu0 %v1063, 101
      %v1075 = vpop.permute.xlu0 %1074
      %v1076 = vsel %vm380, %v1069, %v1071
      %v1077 = vsel %vm380, %v1071, %v1073
      %v1078 = vsel %vm380, %v1073, %v1075
      %1082 = vst [vmem:[#allocation3 + $0x60] sm:$0xff] %v1076
      %1083 = vst [vmem:[#allocation3 + $0x68] sm:$0xff] %v1077
      %1084 = vst [vmem:[#allocation3 + $0x70] sm:$0xff] %v1078
      %v1085 = vld [vmem:[#allocation2] sm:$0xff]
      %v1086 = vld [vmem:[#allocation2 + $0x8] sm:$0xff]
      %v1087 = vld [vmem:[#allocation2 + $0x10] sm:$0xff]
      %v1088 = vld [vmem:[#allocation2 + $0x18] sm:$0xff]
      %1093 = vrot.lane.b32.xlu0 %v1085, 124
      %v1094 = vpop.permute.xlu0 %1093
      %1095 = vrot.lane.b32.xlu0 %v1086, 124
      %v1096 = vpop.permute.xlu0 %1095
      %1097 = vrot.lane.b32.xlu0 %v1087, 124
      %v1098 = vpop.permute.xlu0 %1097
      %1099 = vrot.lane.b32.xlu0 %v1088, 124
      %v1100 = vpop.permute.xlu0 %1099
      %v1101 = vsel %vm406, %v1094, %v1096
      %v1102 = vsel %vm406, %v1096, %v1098
      %v1103 = vsel %vm406, %v1098, %v1100
      %1107 = vst [vmem:[#allocation3 + $0x78] sm:$0xff] %v1101
      %1108 = vst [vmem:[#allocation3 + $0x80] sm:$0xff] %v1102
      %1109 = vst [vmem:[#allocation3 + $0x88] sm:$0xff] %v1103
      %v1110 = vld [vmem:[#allocation2] sm:$0xff]
      %v1111 = vld [vmem:[#allocation2 + $0x8] sm:$0xff]
      %v1112 = vld [vmem:[#allocation2 + $0x10] sm:$0xff]
      %v1113 = vld [vmem:[#allocation2 + $0x18] sm:$0xff]
      %1118 = vrot.lane.b32.xlu0 %v1110, 79
      %v1119 = vpop.permute.xlu0 %1118
      %1120 = vrot.lane.b32.xlu0 %v1111, 79
      %v1121 = vpop.permute.xlu0 %1120
      %1122 = vrot.lane.b32.xlu0 %v1112, 79
      %v1123 = vpop.permute.xlu0 %1122
      %1124 = vrot.lane.b32.xlu0 %v1113, 79
      %v1125 = vpop.permute.xlu0 %1124
      %v1126 = vsel %vm432, %v1119, %v1121
      %v1127 = vsel %vm432, %v1121, %v1123
      %v1128 = vsel %vm432, %v1123, %v1125
      %1132 = vst [vmem:[#allocation3 + $0x90] sm:$0xff] %v1126
      %1133 = vst [vmem:[#allocation3 + $0x98] sm:$0xff] %v1127
      %1134 = vst [vmem:[#allocation3 + $0xa0] sm:$0xff] %v1128
      %v1135 = vld [vmem:[#allocation2] sm:$0xff]
      %v1136 = vld [vmem:[#allocation2 + $0x8] sm:$0xff]
      %v1137 = vld [vmem:[#allocation2 + $0x10] sm:$0xff]
      %v1138 = vld [vmem:[#allocation2 + $0x18] sm:$0xff]
      %1143 = vrot.lane.b32.xlu0 %v1135, 80
      %v1144 = vpop.permute.xlu0 %1143
      %1145 = vrot.lane.b32.xlu0 %v1136, 80
      %v1146 = vpop.permute.xlu0 %1145
      %1147 = vrot.lane.b32.xlu0 %v1137, 80
      %v1148 = vpop.permute.xlu0 %1147
      %1149 = vrot.lane.b32.xlu0 %v1138, 80
      %v1150 = vpop.permute.xlu0 %1149
      %v1151 = vsel %vm458, %v1144, %v1146
      %v1152 = vsel %vm458, %v1146, %v1148
      %v1153 = vsel %vm458, %v1148, %v1150
      %1157 = vst [vmem:[#allocation3 + $0xa8] sm:$0xff] %v1151
      %1158 = vst [vmem:[#allocation3 + $0xb0] sm:$0xff] %v1152
      %1159 = vst [vmem:[#allocation3 + $0xb8] sm:$0xff] %v1153
      %v1160 = vld [vmem:[#allocation2] sm:$0xff]
      %v1161 = vld [vmem:[#allocation2 + $0x8] sm:$0xff]
      %v1162 = vld [vmem:[#allocation2 + $0x10] sm:$0xff]
      %v1163 = vld [vmem:[#allocation2 + $0x18] sm:$0xff]
      %1168 = vrot.lane.b32.xlu0 %v1160, 78
      %v1169 = vpop.permute.xlu0 %1168
      %1170 = vrot.lane.b32.xlu0 %v1161, 78
      %v1171 = vpop.permute.xlu0 %1170
      %1172 = vrot.lane.b32.xlu0 %v1162, 78
      %v1173 = vpop.permute.xlu0 %1172
      %1174 = vrot.lane.b32.xlu0 %v1163, 78
      %v1175 = vpop.permute.xlu0 %1174
      %v1176 = vsel %vm484, %v1169, %v1171
      %v1177 = vsel %vm484, %v1171, %v1173
      %v1178 = vsel %vm484, %v1173, %v1175
      %1182 = vst [vmem:[#allocation3 + $0xc0] sm:$0xff] %v1176
      %1183 = vst [vmem:[#allocation3 + $0xc8] sm:$0xff] %v1177
      %1184 = vst [vmem:[#allocation3 + $0xd0] sm:$0xff] %v1178
      %v1185 = vld [vmem:[#allocation2] sm:$0xff]
      %v1186 = vld [vmem:[#allocation2 + $0x8] sm:$0xff]
      %v1187 = vld [vmem:[#allocation2 + $0x10] sm:$0xff]
      %v1188 = vld [vmem:[#allocation2 + $0x18] sm:$0xff]
      %1193 = vrot.lane.b32.xlu0 %v1185, 78
      %v1194 = vpop.permute.xlu0 %1193
      %1195 = vrot.lane.b32.xlu0 %v1186, 78
      %v1196 = vpop.permute.xlu0 %1195
      %1197 = vrot.lane.b32.xlu0 %v1187, 78
      %v1198 = vpop.permute.xlu0 %1197
      %1199 = vrot.lane.b32.xlu0 %v1188, 78
      %v1200 = vpop.permute.xlu0 %1199
      %v1201 = vsel %vm484, %v1194, %v1196
      %v1202 = vsel %vm484, %v1196, %v1198
      %v1203 = vsel %vm484, %v1198, %v1200
      %1207 = vst [vmem:[#allocation3 + $0xd8] sm:$0xff] %v1201
      %1208 = vst [vmem:[#allocation3 + $0xe0] sm:$0xff] %v1202
      %1209 = vst [vmem:[#allocation3 + $0xe8] sm:$0xff] %v1203
      %v1210 = vld [vmem:[#allocation2] sm:$0xff]
      %v1211 = vld [vmem:[#allocation2 + $0x8] sm:$0xff]
      %v1212 = vld [vmem:[#allocation2 + $0x10] sm:$0xff]
      %v1213 = vld [vmem:[#allocation2 + $0x18] sm:$0xff]
      %1218 = vrot.lane.b32.xlu0 %v1210, 77
      %v1219 = vpop.permute.xlu0 %1218
      %1220 = vrot.lane.b32.xlu0 %v1211, 77
      %v1221 = vpop.permute.xlu0 %1220
      %1222 = vrot.lane.b32.xlu0 %v1212, 77
      %v1223 = vpop.permute.xlu0 %1222
      %1224 = vrot.lane.b32.xlu0 %v1213, 77
      %v1225 = vpop.permute.xlu0 %1224
      %v1226 = vsel %vm535, %v1219, %v1221
      %v1227 = vsel %vm535, %v1221, %v1223
      %v1228 = vsel %vm535, %v1223, %v1225
      %1232 = vst [vmem:[#allocation3 + $0xf0] sm:$0xff] %v1226
      %1233 = vst [vmem:[#allocation3 + $0xf8] sm:$0xff] %v1227
      %1234 = vst [vmem:[#allocation3 + $0x100] sm:$0xff] %v1228
      %v1235 = vld [vmem:[#allocation2] sm:$0xff]
      %v1236 = vld [vmem:[#allocation2 + $0x8] sm:$0xff]
      %v1237 = vld [vmem:[#allocation2 + $0x10] sm:$0xff]
      %v1238 = vld [vmem:[#allocation2 + $0x18] sm:$0xff]
      %1243 = vrot.lane.b32.xlu0 %v1235, 76
      %v1244 = vpop.permute.xlu0 %1243
      %1245 = vrot.lane.b32.xlu0 %v1236, 76
      %v1246 = vpop.permute.xlu0 %1245
      %1247 = vrot.lane.b32.xlu0 %v1237, 76
      %v1248 = vpop.permute.xlu0 %1247
      %1249 = vrot.lane.b32.xlu0 %v1238, 76
      %v1250 = vpop.permute.xlu0 %1249
      %v1251 = vsel %vm561, %v1244, %v1246
      %v1252 = vsel %vm561, %v1246, %v1248
      %v1253 = vsel %vm561, %v1248, %v1250
      %1257 = vst [vmem:[#allocation3 + $0x108] sm:$0xff] %v1251
      %1258 = vst [vmem:[#allocation3 + $0x110] sm:$0xff] %v1252
      %1259 = vst [vmem:[#allocation3 + $0x118] sm:$0xff] %v1253
      %v1260 = vld [vmem:[#allocation2] sm:$0xff]
      %v1261 = vld [vmem:[#allocation2 + $0x8] sm:$0xff]
      %v1262 = vld [vmem:[#allocation2 + $0x10] sm:$0xff]
      %v1263 = vld [vmem:[#allocation2 + $0x18] sm:$0xff]
      %1268 = vrot.lane.b32.xlu0 %v1260, 55
      %v1269 = vpop.permute.xlu0 %1268
      %1270 = vrot.lane.b32.xlu0 %v1261, 55
      %v1271 = vpop.permute.xlu0 %1270
      %1272 = vrot.lane.b32.xlu0 %v1262, 55
      %v1273 = vpop.permute.xlu0 %1272
      %1274 = vrot.lane.b32.xlu0 %v1263, 55
      %v1275 = vpop.permute.xlu0 %1274
      %v1276 = vsel %vm587, %v1269, %v1271
      %v1277 = vsel %vm587, %v1271, %v1273
      %v1278 = vsel %vm587, %v1273, %v1275
      %1282 = vst [vmem:[#allocation3 + $0x120] sm:$0xff] %v1276
      %1283 = vst [vmem:[#allocation3 + $0x128] sm:$0xff] %v1277
      %1284 = vst [vmem:[#allocation3 + $0x130] sm:$0xff] %v1278
      %v1285 = vld [vmem:[#allocation2] sm:$0xff]
      %v1286 = vld [vmem:[#allocation2 + $0x8] sm:$0xff]
      %v1287 = vld [vmem:[#allocation2 + $0x10] sm:$0xff]
      %v1288 = vld [vmem:[#allocation2 + $0x18] sm:$0xff]
      %1293 = vrot.lane.b32.xlu0 %v1285, 32
      %v1294 = vpop.permute.xlu0 %1293
      %1295 = vrot.lane.b32.xlu0 %v1286, 32
      %v1296 = vpop.permute.xlu0 %1295
      %1297 = vrot.lane.b32.xlu0 %v1287, 32
      %v1298 = vpop.permute.xlu0 %1297
      %1299 = vrot.lane.b32.xlu0 %v1288, 32
      %v1300 = vpop.permute.xlu0 %1299
      %v1301 = vsel %vm613, %v1294, %v1296
      %v1302 = vsel %vm613, %v1296, %v1298
      %v1303 = vsel %vm613, %v1298, %v1300
      %1307 = vst [vmem:[#allocation3 + $0x138] sm:$0xff] %v1301
      %1308 = vst [vmem:[#allocation3 + $0x140] sm:$0xff] %v1302
      %1309 = vst [vmem:[#allocation3 + $0x148] sm:$0xff] %v1303
      %v1310 = vld [vmem:[#allocation2] sm:$0xff]
      %v1311 = vld [vmem:[#allocation2 + $0x8] sm:$0xff]
      %v1312 = vld [vmem:[#allocation2 + $0x10] sm:$0xff]
      %v1313 = vld [vmem:[#allocation2 + $0x18] sm:$0xff]
      %1318 = vrot.lane.b32.xlu0 %v1310, 54
      %v1319 = vpop.permute.xlu0 %1318
      %1320 = vrot.lane.b32.xlu0 %v1311, 54
      %v1321 = vpop.permute.xlu0 %1320
      %1322 = vrot.lane.b32.xlu0 %v1312, 54
      %v1323 = vpop.permute.xlu0 %1322
      %1324 = vrot.lane.b32.xlu0 %v1313, 54
      %v1325 = vpop.permute.xlu0 %1324
      %v1326 = vsel %vm639, %v1319, %v1321
      %v1327 = vsel %vm639, %v1321, %v1323
      %v1328 = vsel %vm639, %v1323, %v1325
      %1332 = vst [vmem:[#allocation3 + $0x150] sm:$0xff] %v1326
      %1333 = vst [vmem:[#allocation3 + $0x158] sm:$0xff] %v1327
      %1334 = vst [vmem:[#allocation3 + $0x160] sm:$0xff] %v1328
      %v1335 = vld [vmem:[#allocation2] sm:$0xff]
      %v1336 = vld [vmem:[#allocation2 + $0x8] sm:$0xff]
      %v1337 = vld [vmem:[#allocation2 + $0x10] sm:$0xff]
      %v1338 = vld [vmem:[#allocation2 + $0x18] sm:$0xff]
      %1343 = vrot.lane.b32.xlu0 %v1335, 30
      %v1344 = vpop.permute.xlu0 %1343
      %1345 = vrot.lane.b32.xlu0 %v1336, 30
      %v1346 = vpop.permute.xlu0 %1345
      %1347 = vrot.lane.b32.xlu0 %v1337, 30
      %v1348 = vpop.permute.xlu0 %1347
      %1349 = vrot.lane.b32.xlu0 %v1338, 30
      %v1350 = vpop.permute.xlu0 %1349
      %v1351 = vsel %vm665, %v1344, %v1346
      %v1352 = vsel %vm665, %v1346, %v1348
      %v1353 = vsel %vm665, %v1348, %v1350
      %1357 = vst [vmem:[#allocation3 + $0x168] sm:$0xff] %v1351
      %1358 = vst [vmem:[#allocation3 + $0x170] sm:$0xff] %v1352
      %1359 = vst [vmem:[#allocation3 + $0x178] sm:$0xff] %v1353
      %v1360 = vld [vmem:[#allocation2] sm:$0xff]
      %v1361 = vld [vmem:[#allocation2 + $0x8] sm:$0xff]
      %v1362 = vld [vmem:[#allocation2 + $0x10] sm:$0xff]
      %v1363 = vld [vmem:[#allocation2 + $0x18] sm:$0xff]
      %1368 = vrot.lane.b32.xlu0 %v1360, 53
      %v1369 = vpop.permute.xlu0 %1368
      %1370 = vrot.lane.b32.xlu0 %v1361, 53
      %v1371 = vpop.permute.xlu0 %1370
      %1372 = vrot.lane.b32.xlu0 %v1362, 53
      %v1373 = vpop.permute.xlu0 %1372
      %1374 = vrot.lane.b32.xlu0 %v1363, 53
      %v1375 = vpop.permute.xlu0 %1374
      %v1376 = vsel %vm691, %v1369, %v1371
      %v1377 = vsel %vm691, %v1371, %v1373
      %v1378 = vsel %vm691, %v1373, %v1375
      %1382 = vst [vmem:[#allocation3 + $0x180] sm:$0xff] %v1376
      %1383 = vst [vmem:[#allocation3 + $0x188] sm:$0xff] %v1377
      %1384 = vst [vmem:[#allocation3 + $0x190] sm:$0xff] %v1378
      %v1385 = vld [vmem:[#allocation2] sm:$0xff]
      %v1386 = vld [vmem:[#allocation2 + $0x8] sm:$0xff]
      %v1387 = vld [vmem:[#allocation2 + $0x10] sm:$0xff]
      %v1388 = vld [vmem:[#allocation2 + $0x18] sm:$0xff]
      %1393 = vrot.lane.b32.xlu0 %v1385, 28
      %v1394 = vpop.permute.xlu0 %1393
      %1395 = vrot.lane.b32.xlu0 %v1386, 28
      %v1396 = vpop.permute.xlu0 %1395
      %1397 = vrot.lane.b32.xlu0 %v1387, 28
      %v1398 = vpop.permute.xlu0 %1397
      %1399 = vrot.lane.b32.xlu0 %v1388, 28
      %v1400 = vpop.permute.xlu0 %1399
      %v1401 = vsel %vm717, %v1394, %v1396
      %v1402 = vsel %vm717, %v1396, %v1398
      %v1403 = vsel %vm717, %v1398, %v1400
      %1407 = vst [vmem:[#allocation3 + $0x198] sm:$0xff] %v1401
      %1408 = vst [vmem:[#allocation3 + $0x1a0] sm:$0xff] %v1402
      %1409 = vst [vmem:[#allocation3 + $0x1a8] sm:$0xff] %v1403
      %v1410 = vld [vmem:[%s3] sm:$0xff]
      %v1411 = vld [vmem:[%s3 + $0x8] sm:$0xff]
      %v1412 = vld [vmem:[#allocation3] sm:$0xff]
      %v1413 = vld [vmem:[#allocation3 + $0x8] sm:$0xff]
      %v1414 = vld [vmem:[#allocation3 + $0x10] sm:$0xff]
      %v1415 = vld [vmem:[#allocation3 + $0x18] sm:$0xff]
      %v1416 = vld [vmem:[#allocation3 + $0x20] sm:$0xff]
      %v1417 = vld [vmem:[#allocation3 + $0x28] sm:$0xff]
      %v1418 = vld [vmem:[#allocation3 + $0x30] sm:$0xff]
      %v1419 = vld [vmem:[#allocation3 + $0x38] sm:$0xff]
      %v1420 = vld [vmem:[#allocation3 + $0x40] sm:$0xff]
      %v1421 = vld [vmem:[#allocation3 + $0x48] sm:$0xff]
      %v1422 = vld [vmem:[#allocation3 + $0x50] sm:$0xff]
      %v1423 = vld [vmem:[#allocation3 + $0x58] sm:$0xff]
      %v1424 = vld [vmem:[#allocation3 + $0x60] sm:$0xff]
      %v1425 = vld [vmem:[#allocation3 + $0x68] sm:$0xff]
      %v1426 = vld [vmem:[#allocation3 + $0x70] sm:$0xff]
      %v1427 = vld [vmem:[#allocation3 + $0x78] sm:$0xff]
      %v1428 = vld [vmem:[#allocation3 + $0x80] sm:$0xff]
      %v1429 = vld [vmem:[#allocation3 + $0x88] sm:$0xff]
      %v1430 = vld [vmem:[#allocation3 + $0x90] sm:$0xff]
      %v1431 = vld [vmem:[#allocation3 + $0x98] sm:$0xff]
      %v1432 = vld [vmem:[#allocation3 + $0xa0] sm:$0xff]
      %v1433 = vld [vmem:[#allocation3 + $0xa8] sm:$0xff]
      %v1434 = vld [vmem:[#allocation3 + $0xb0] sm:$0xff]
      %v1435 = vld [vmem:[#allocation3 + $0xb8] sm:$0xff]
      %v1436 = vld [vmem:[#allocation3 + $0xc0] sm:$0xff]
      %v1437 = vld [vmem:[#allocation3 + $0xc8] sm:$0xff]
      %v1438 = vld [vmem:[#allocation3 + $0xd0] sm:$0xff]
      %v1439 = vld [vmem:[#allocation3 + $0xd8] sm:$0xff]
      %v1440 = vld [vmem:[#allocation3 + $0xe0] sm:$0xff]
      %v1441 = vld [vmem:[#allocation3 + $0xe8] sm:$0xff]
      %v1442 = vld [vmem:[#allocation3 + $0xf0] sm:$0xff]
      %v1443 = vld [vmem:[#allocation3 + $0xf8] sm:$0xff]
      %v1444 = vld [vmem:[#allocation3 + $0x100] sm:$0xff]
      %v1445 = vld [vmem:[#allocation3 + $0x108] sm:$0xff]
      %v1446 = vld [vmem:[#allocation3 + $0x110] sm:$0xff]
      %v1447 = vld [vmem:[#allocation3 + $0x118] sm:$0xff]
      %v1448 = vld [vmem:[#allocation3 + $0x120] sm:$0xff]
      %v1449 = vld [vmem:[#allocation3 + $0x128] sm:$0xff]
      %v1450 = vld [vmem:[#allocation3 + $0x130] sm:$0xff]
      %v1451 = vld [vmem:[#allocation3 + $0x138] sm:$0xff]
      %v1452 = vld [vmem:[#allocation3 + $0x140] sm:$0xff]
      %v1453 = vld [vmem:[#allocation3 + $0x148] sm:$0xff]
      %v1454 = vld [vmem:[#allocation3 + $0x150] sm:$0xff]
      %v1455 = vld [vmem:[#allocation3 + $0x158] sm:$0xff]
      %v1456 = vld [vmem:[#allocation3 + $0x160] sm:$0xff]
      %v1457 = vld [vmem:[#allocation3 + $0x168] sm:$0xff]
      %v1458 = vld [vmem:[#allocation3 + $0x170] sm:$0xff]
      %v1459 = vld [vmem:[#allocation3 + $0x178] sm:$0xff]
      %v1460 = vld [vmem:[#allocation3 + $0x180] sm:$0xff]
      %v1461 = vld [vmem:[#allocation3 + $0x188] sm:$0xff]
      %v1462 = vld [vmem:[#allocation3 + $0x190] sm:$0xff]
      %v1463 = vld [vmem:[#allocation3 + $0x198] sm:$0xff]
      %v1464 = vld [vmem:[#allocation3 + $0x1a0] sm:$0xff]
      %v1465 = vld [vmem:[#allocation3 + $0x1a8] sm:$0xff]
      %v1466 = vld [vmem:[%s4] sm:$0xff]
      %1468 = vset.pattern.permute.xlu0 0
      %1469 = vperm.xlu0 %1468, %v1466
      %v1470 = vpop.permute.xlu0 %1469
      %v1473 = vsel %vm789, %v1411, 0
      %1475 = vmatprep.subr.mxu0 %v1458
      %1476 = vmatpush1.msra.mxu0 %v1457
      %1477 = vmatprep.subr.mxu0 %v1455
      %1478 = vmatpush1.msra.mxu0 %v1454
      %1479 = vmatprep.subr.mxu0 %v1452
      %1480 = vmatpush1.msra.mxu0 %v1451
      %1481 = vmatprep.subr.mxu0 %v1449
      %1482 = vmatpush1.msra.mxu0 %v1448
      %1483 = vmatprep.subr.mxu0 %v1446
      %1484 = vmatpush1.msra.mxu0 %v1445
      %1485 = vmatprep.subr.mxu0 %v1443
      %1486 = vmatpush1.msra.mxu0 %v1442
      %1487 = vmatprep.subr.mxu0 %v1440
      %1488 = vmatpush1.msra.mxu0 %v1439
      %1489 = vmatprep.subr.mxu0 %v1437
      %1490 = vmatpush1.msra.mxu0 %v1436
      %1491 = vmatprep.subr.mxu0 %v1434
      %1492 = vmatpush1.msra.mxu0 %v1433
      %1493 = vmatprep.subr.mxu0 %v1431
      %1494 = vmatpush1.msra.mxu0 %v1430
      %1495 = vmatprep.subr.mxu0 %v1428
      %1496 = vmatpush1.msra.mxu0 %v1427
      %1497 = vmatprep.subr.mxu0 %v1425
      %1498 = vmatpush1.msra.mxu0 %v1424
      %1499 = vmatprep.subr.mxu0 %v1422
      %1500 = vmatpush1.msra.mxu0 %v1421
      %1501 = vmatprep.subr.mxu0 %v1419
      %1502 = vmatpush1.msra.mxu0 %v1418
      %1503 = vmatprep.subr.mxu0 %v1416
      %1504 = vmatpush1.msra.mxu0 %v1415
      %1505 = vmatprep.subr.mxu0 %v1413
      %1506 = vmatpush1.msra.mxu0 %v1412
      %1507 = vmatprep.subr.mxu0 0.0
      %1508 = vmatpush2.msra.mxu0 0.0
      %1509 = vmatprep.subr.mxu0 0.0
      %1510 = vmatpush2.msra.mxu0 0.0
      %1511 = vmatprep.subr.mxu0 0.0
      %1512 = vmatpush2.msra.mxu0 0.0
      %1513 = vmatprep.subr.mxu0 0.0
      %1514 = vmatpush2.msra.mxu0 0.0
      %1515 = vmatprep.subr.mxu0 0.0
      %1516 = vmatpush2.msra.mxu0 0.0
      %1517 = vmatprep.subr.mxu0 0.0
      %1518 = vmatpush2.msra.mxu0 0.0
      %1519 = vmatprep.subr.mxu0 0.0
      %1520 = vmatpush2.msra.mxu0 0.0
      %1521 = vmatprep.subr.mxu0 0.0
      %1522 = vmatpush2.msra.mxu0 0.0
      %1523 = vmatprep.subr.mxu0 0.0
      %1524 = vmatpush2.msra.mxu0 0.0
      %1525 = vmatprep.subr.mxu0 0.0
      %1526 = vmatpush2.msra.mxu0 0.0
      %1527 = vmatprep.subr.mxu0 0.0
      %1528 = vmatpush2.msra.mxu0 0.0
      %1529 = vmatprep.subr.mxu0 0.0
      %1530 = vmatpush2.msra.mxu0 0.0
      %1531 = vmatprep.subr.mxu0 0.0
      %1532 = vmatpush2.msra.mxu0 0.0
      %1533 = vmatprep.subr.mxu0 0.0
      %1534 = vmatpush2.msra.mxu0 0.0
      %1535 = vmatprep.subr.mxu0 %v1464
      %1536 = vmatpush2.msra.mxu0 %v1463
      %1537 = vmatprep.subr.mxu0 %v1461
      %1538 = vmatpush2.msra.mxu0 %v1460
      %1539 = vmatprep.mubr.f32.mxu0 %v1473
      %1540 = vmatmul.mubr.f32.gmra.mxu0 %v1410
      %v1541 = vpop.f32.mrf.mxu0
      %v1542 = vadd.f32 %v1470, %v1541
      %v1543 = vpop.f32.mrf.mxu0
      %v1544 = vadd.f32 %v1470, %v1543
      %1545 = vdwg.mxu0
      %1546 = vmatprep.subr.mxu0 0.0
      %1547 = vmatpush1.msra.mxu0 %v1459
      %1548 = vmatprep.subr.mxu0 0.0
      %1549 = vmatpush1.msra.mxu0 %v1456
      %1550 = vmatprep.subr.mxu0 0.0
      %1551 = vmatpush1.msra.mxu0 %v1453
      %1552 = vmatprep.subr.mxu0 0.0
      %1553 = vmatpush1.msra.mxu0 %v1450
      %1554 = vmatprep.subr.mxu0 0.0
      %1555 = vmatpush1.msra.mxu0 %v1447
      %1556 = vmatprep.subr.mxu0 0.0
      %1557 = vmatpush1.msra.mxu0 %v1444
      %1558 = vmatprep.subr.mxu0 0.0
      %1559 = vmatpush1.msra.mxu0 %v1441
      %1560 = vmatprep.subr.mxu0 0.0
      %1561 = vmatpush1.msra.mxu0 %v1438
      %1562 = vmatprep.subr.mxu0 0.0
      %1563 = vmatpush1.msra.mxu0 %v1435
      %1564 = vmatprep.subr.mxu0 0.0
      %1565 = vmatpush1.msra.mxu0 %v1432
      %1566 = vmatprep.subr.mxu0 0.0
      %1567 = vmatpush1.msra.mxu0 %v1429
      %1568 = vmatprep.subr.mxu0 0.0
      %1569 = vmatpush1.msra.mxu0 %v1426
      %1570 = vmatprep.subr.mxu0 0.0
      %1571 = vmatpush1.msra.mxu0 %v1423
      %1572 = vmatprep.subr.mxu0 0.0
      %1573 = vmatpush1.msra.mxu0 %v1420
      %1574 = vmatprep.subr.mxu0 0.0
      %1575 = vmatpush1.msra.mxu0 %v1417
      %1576 = vmatprep.subr.mxu0 0.0
      %1577 = vmatpush1.msra.mxu0 %v1414
      %1578 = vmatprep.subr.mxu0 0.0
      %1579 = vmatpush2.msra.mxu0 0.0
      %1580 = vmatprep.subr.mxu0 0.0
      %1581 = vmatpush2.msra.mxu0 0.0
      %1582 = vmatprep.subr.mxu0 0.0
      %1583 = vmatpush2.msra.mxu0 0.0
      %1584 = vmatprep.subr.mxu0 0.0
      %1585 = vmatpush2.msra.mxu0 0.0
      %1586 = vmatprep.subr.mxu0 0.0
      %1587 = vmatpush2.msra.mxu0 0.0
      %1588 = vmatprep.subr.mxu0 0.0
      %1589 = vmatpush2.msra.mxu0 0.0
      %1590 = vmatprep.subr.mxu0 0.0
      %1591 = vmatpush2.msra.mxu0 0.0
      %1592 = vmatprep.subr.mxu0 0.0
      %1593 = vmatpush2.msra.mxu0 0.0
      %1594 = vmatprep.subr.mxu0 0.0
      %1595 = vmatpush2.msra.mxu0 0.0
      %1596 = vmatprep.subr.mxu0 0.0
      %1597 = vmatpush2.msra.mxu0 0.0
      %1598 = vmatprep.subr.mxu0 0.0
      %1599 = vmatpush2.msra.mxu0 0.0
      %1600 = vmatprep.subr.mxu0 0.0
      %1601 = vmatpush2.msra.mxu0 0.0
      %1602 = vmatprep.subr.mxu0 0.0
      %1603 = vmatpush2.msra.mxu0 0.0
      %1604 = vmatprep.subr.mxu0 0.0
      %1605 = vmatpush2.msra.mxu0 0.0
      %1606 = vmatprep.subr.mxu0 0.0
      %1607 = vmatpush2.msra.mxu0 %v1465
      %1608 = vmatprep.subr.mxu0 0.0
      %1609 = vmatpush2.msra.mxu0 %v1462
      %1610 = vmatprep.mubr.f32.mxu0 %v1473
      %1611 = vmatmul.mubr.f32.gmra.mxu0 %v1410
      %v1612 = vpop.f32.mrf.mxu0
      %v1613 = vadd.f32 %v1470, %v1612
      %v1614 = vpop.f32.mrf.mxu0
      %1615 = vdwg.mxu0
      %v1616 = vld [vmem:[%s246] sm:$0xff]
      %v1617 = vld [vmem:[%s246 + $0x8] sm:$0xff]
      %v1618 = vld [vmem:[%s246 + $0x10] sm:$0xff]
      %v1619 = vadd.f32 %v1542, %v1616
      %v1620 = vadd.f32 %v1544, %v1617
      %v1621 = vadd.f32 %v1613, %v1618
      %v1622 = vmul.f32 %v1619, 0.1
      %v1623 = vmul.f32 %v1620, 0.1
      %v1624 = vmul.f32 %v1621, 0.1
      %v1625 = vmax.f32 %v1619, %v1622
      %v1626 = vmax.f32 %v1620, %v1623
      %v1627 = vmax.f32 %v1621, %v1624
      %1628 = vst [vmem:[%s251] sm:$0xff] %v1625
      %1629 = vst [vmem:[%s251 + $0x8] sm:$0xff] %v1626
      %1630 = vst [vmem:[%s251 + $0x10] sm:$0xff] %v1627
      %p1631 = scmp.lt.s32.totalorder %s17, 1
      %s1632 = scalar_select %p1631, %s17, 1
      %s1633 = smul.addr %s1632, 3
      %s1634 = smul.addr %s1633, 8
      %s1635 = scalar_lea.vmem %s6, %s1634
      // Predicated region
      $region45: #{tbasic_block_forward.1} parent=43 // pred_check
        %p1636 = pneg %p166
      $region46: #{tbasic_block_forward.1} parent=43 // pred_check_branch
        %1638 = sbr.rel (%p1636) target = $region48
      $region47: #{tbasic_block_forward.1} parent=43 // pred_region
        _
      $region48: #{tbasic_block_forward.1} parent=43 // pred_fallthru
        _
    $region44: #{tbasic_block_forward.1} parent=5 // pred_fallthru
      _
    %p1639 = scmp.le.s32.totalorder 2, %s12
    // Predicated region
    $region49: #{tbasic_block_forward.1} parent=5 // pred_check
      %p1640 = pneg %p1639
    $region50: #{tbasic_block_forward.1} parent=5 // pred_check_branch
      %1642 = sbr.rel (%p1640) target = $region52
    $region51: #{tbasic_block_forward.1} parent=5 // pred_region
      %s1643 = ssub.s32 %s12, 2
      // Predicated region
      $region53: #{tbasic_block_forward.1} parent=51 // pred_check
        %p1644 = pneg %p172
      $region54: #{tbasic_block_forward.1} parent=51 // pred_check_branch
        %1646 = sbr.rel (%p1644) target = $region56
      $region55: #{tbasic_block_forward.1} parent=51 // pred_region
        %p1647 = scmp.lt.s32.totalorder %s18, 1
        %s1648 = scalar_select %p1647, %s18, 1
        %s1649 = smul.addr %s1648, 3
        %s1650 = smul.addr %s1649, 8
        %s1651 = scalar_lea.vmem %s6, %s1650
      $region56: #{tbasic_block_forward.1} parent=51 // pred_fallthru
        _
    $region52: #{tbasic_block_forward.1} parent=5 // pred_fallthru
      _
  $region6: #{tbasic_block_forward.1} parent=0 // loop_footer
    %s16 = sadd.s32 1, %s12
  $region7: #{tbasic_block_forward.1} parent=0 // loop_footer_branch
    %11 = sbr.rel target = $region3
  $region8: #{tbasic_block_forward.1} parent=0 // loop_exit
    _

</llo_original>
